<compile_context>
chip_gen: v7x
topology: tpu7x:2x2x1
jax: 0.10.0
libtpu: 0.0.40
codegen_flags: <defaults>
</compile_context>

<pallas_src>
import numpy as np
import jax
import jax.numpy as jnp
from jax.experimental import pallas as pl
from jax.experimental.pallas import tpu as pltpu

_EPS = 1e-5


# ----------------------------- fused Pallas kernel ---------------------------------------
def _dgcn_fused_call(N, C_in, T, T_out, V, C, C_out, k):
    CINC = C_in * C            # stage-1 lane dim: column index = ci*C + c
    COC = C_out * C            # stage-2 lane dim: column index = co*C + c
    TV = T * V                 # stage-1 row dim:  row index = t*V + v
    T_pad = T + 2              # Conv3d padding=(1,0,0): one zero frame each side of T

    def kernel(s1_ref, b1_ref, b2_ref, w2_ref, xl_ref, bdo_ref, bdd_ref, o_ref, ypad_ref):
        # ---- stage 1a: A_origin multiply for ALL (t, ci) as ONE MXU matmul --------------
        # bdo = blockdiag_t(A_origin_t)  (T*V, T*V);  xl rows=(t,v), cols=(ci,c).
        m1 = jnp.dot(bdo_ref[0], xl_ref[0],
                     preferred_element_type=jnp.float32).astype(jnp.bfloat16)   # (T*V, C_in*C)

        # hoisted BN1 row vectors (loaded / broadcast once, reused across the t loop)
        s1 = jnp.broadcast_to(s1_ref[...], (V, CINC))
        b1 = jnp.broadcast_to(b1_ref[...], (V, CINC))

        # zero the two temporal halo frames of the padded stage-1 scratch
        zero_frame = jnp.zeros((V, CINC), jnp.bfloat16)
        ypad_ref[0:V, :] = zero_frame
        ypad_ref[(T_pad - 1) * V:T_pad * V, :] = zero_frame

        # ---- stage 1b: A_dest multiply, batched over C_in via kron(I_Cin, A_dest_t) -----
        for t in range(T):                                      # static unroll (T small)
            y = jnp.dot(m1[t * V:(t + 1) * V, :], bdd_ref[0, t],
                        preferred_element_type=jnp.float32)     # (V, C_in*C) f32
            y = jnp.maximum(y * s1 + b1, 0.0)                   # BN1(eval) + ReLU, f32
            ypad_ref[(t + 1) * V:(t + 2) * V, :] = y.astype(jnp.bfloat16)

        # ---- stage 2: Conv3d((k,1,1), pad=(1,0,0)) + bias + BN2(eval) + final ReLU ------
        # w2[kt] = kron-expanded conv weights with the BN2 scale folded in:
        #   w2[kt, ci*C + c', co*C + c] = (c' == c) * W[co, ci, kt] * scale2[co]
        # so acc[(t,v),(co,c)] = sum_kt Slab_kt @ w2[kt] is the whole conv, on the MXU.
        acc = jnp.dot(ypad_ref[0:T_out * V, :], w2_ref[0],
                      preferred_element_type=jnp.float32)       # (T_out*V, C_out*C) f32
        for kt in range(1, k):
            acc = acc + jnp.dot(ypad_ref[kt * V:(kt + T_out) * V, :], w2_ref[kt],
                                preferred_element_type=jnp.float32)
        o_ref[0] = jnp.maximum(acc + b2_ref[...], 0.0).astype(o_ref.dtype)

    grid_spec = pltpu.PrefetchScalarGridSpec(
        num_scalar_prefetch=0,
        grid=(N,),
        in_specs=[
            pl.BlockSpec((1, CINC), lambda n: (0, 0)),                 # BN1 scale per (ci) col
            pl.BlockSpec((1, CINC), lambda n: (0, 0)),                 # BN1 shift per (ci) col
            pl.BlockSpec((1, COC), lambda n: (0, 0)),                  # BN2 shift (+conv bias) per (co) col
            pl.BlockSpec((k, CINC, COC), lambda n: (0, 0, 0)),         # kron-expanded conv weights
            pl.BlockSpec((1, TV, CINC), lambda n: (n, 0, 0)),          # x: rows=(t,v), cols=(ci,c)
            pl.BlockSpec((1, TV, TV), lambda n: (n, 0, 0)),            # blockdiag_t(A_origin)
            pl.BlockSpec((1, T, CINC, CINC), lambda n: (n, 0, 0, 0)),  # kron(I_Cin, A_dest_t)
        ],
        out_specs=pl.BlockSpec((1, T_out * V, COC), lambda n: (n, 0, 0)),
        scratch_shapes=[pltpu.VMEM((T_pad * V, CINC), jnp.bfloat16)],  # padded stage-1 output
    )
    return pl.pallas_call(
        kernel,
        grid_spec=grid_spec,
        out_shape=jax.ShapeDtypeStruct((N, T_out * V, COC), jnp.float32),
        compiler_params=pltpu.CompilerParams(dimension_semantics=("parallel",)),
    )


# --------------------------------------- Module ------------------------------------------
class DGCNPallas:
    """Pallas TPU implementation of DGCN.forward (inference / eval semantics)."""

    def __init__(self, C_in, C_out, kernel_size, is_A_OD=True, seed=42):
        self.C_in, self.C_out, self.k, self.is_A_OD = C_in, C_out, kernel_size, is_A_OD
        kw, kb = jax.random.split(jax.random.PRNGKey(seed))
        # Conv3d(C_in, C_out, kernel=(k,1,1), padding=(1,0,0), stride=1, bias=True)
        self.weight = 0.3 * jax.random.normal(kw, (C_out, C_in, kernel_size, 1, 1), jnp.float32)
        self.bias = 0.1 * jax.random.normal(kb, (C_out,), jnp.float32)
        # BatchNorm3d(C_in) / BatchNorm3d(C_out): deterministic affine params + running stats.
        self.gamma1 = 1.0 + 0.05 * jnp.arange(C_in, dtype=jnp.float32)
        self.beta1 = 0.02 * jnp.arange(C_in, dtype=jnp.float32) - 0.03
        self.mean1 = 0.05 * jnp.arange(C_in, dtype=jnp.float32) - 0.10
        self.var1 = 1.0 + 0.10 * jnp.arange(C_in, dtype=jnp.float32)
        self.gamma2 = 1.0 - 0.03 * jnp.arange(C_out, dtype=jnp.float32)
        self.beta2 = 0.01 * jnp.arange(C_out, dtype=jnp.float32)
        self.mean2 = 0.04 * jnp.arange(C_out, dtype=jnp.float32) - 0.05
        self.var2 = 1.0 + 0.05 * jnp.arange(C_out, dtype=jnp.float32)

    def __call__(self, x, A):
        N, C_in, T, V, C = x.shape
        assert C_in == self.C_in
        # TODO(synk): is_A_OD=False / C != V single-bmm branch not implemented (OD path only).
        assert self.is_A_OD and C == V
        k, C_out = self.k, self.C_out
        T_out = T + 2 - k + 1
        f32, bf16 = jnp.float32, jnp.bfloat16

        # Fold eval-mode BN params (and conv bias / BN2 scale) outside the kernel.
        scale1 = self.gamma1 / jnp.sqrt(self.var1 + _EPS)
        shift1 = self.beta1 - self.mean1 * scale1
        scale2 = self.gamma2 / jnp.sqrt(self.var2 + _EPS)
        shift2 = scale2 * (self.bias - self.mean2) + self.beta2            # conv bias folded in
        s1cols = jnp.repeat(scale1, C)[None, :].astype(f32)                # (1, C_in*C)
        b1cols = jnp.repeat(shift1, C)[None, :].astype(f32)                # (1, C_in*C)
        b2cols = jnp.repeat(shift2, C)[None, :].astype(f32)                # (1, C_out*C)

        # Stage-2 weights: kron-expand + fold BN2 scale so the conv becomes k MXU matmuls:
        #   w2[kt, ci*C + c', co*C + c] = (c'==c) * W[co, ci, kt] * scale2[co]
        Wk = self.weight[:, :, :, 0, 0] * scale2[:, None, None]            # (C_out, C_in, k)
        eyeC = jnp.eye(C, dtype=f32)
        w2 = jnp.einsum('oik,ab->kiaob', Wk, eyeC).reshape(k, C_in * C, C_out * C).astype(bf16)

        # One-time input layout plumbing (tiny XLA ops):
        #   xL rows = (t, v), cols = (ci, c) so stage-1a is one big lane-dense MXU matmul.
        xL = x.transpose(0, 2, 3, 1, 4).reshape(N, T * V, C_in * C).astype(bf16)
        #   bdo = block-diagonal over t of A_origin_t : (N, T*V, T*V)
        eyeT = jnp.eye(T, dtype=f32)
        bdo = jnp.einsum('tp,ntvu->ntvpu', eyeT, A[:, :, 0]).reshape(N, T * V, T * V).astype(bf16)
        #   bdd = per-t kron(I_Cin, A_dest_t) : (N, T, C_in*C, C_in*C)
        eyeI = jnp.eye(C_in, dtype=f32)
        bdd = jnp.einsum('ij,ntab->ntiajb', eyeI, A[:, :, 1]).reshape(
            N, T, C_in * C, C_in * C).astype(bf16)

        out = _dgcn_fused_call(N, C_in, T, T_out, V, C, C_out, k)(
            s1cols, b1cols, b2cols, w2, xL, bdo, bdd)
        # Kernel emits a fully lane-dense (N, T_out*V, C_out*C) slab; permute back to the
        # module's (N, C_out, T_out, V, C) layout with one tiny XLA op (~256 KB).
        out = out.reshape(N, T_out, V, C_out, C).transpose(0, 3, 1, 2, 4)
        # Dropout3d(p=0.2, inplace=True) -> identity at inference.
        return out

    # Pure-JAX f32 reference (same eval semantics) for correctness checking.
    def reference(self, x, A):
        N, C_in, T, V, C = x.shape
        k, C_out = self.k, self.C_out
        B = N * C_in * T
        Ao = jnp.broadcast_to(A[:, None, :, 0], (N, C_in, T, V, V)).reshape(B, V, V)
        Ad = jnp.broadcast_to(A[:, None, :, 1], (N, C_in, T, V, V)).reshape(B, V, V)
        xb = x.reshape(B, V, C)
        y = jnp.einsum('bij,bjc->bic', Ao, xb)
        y = jnp.einsum('bic,bcd->bid', y, Ad).reshape(N, C_in, T, V, C)
        s1 = (self.gamma1 / jnp.sqrt(self.var1 + _EPS)).reshape(1, C_in, 1, 1, 1)
        b1 = self.beta1.reshape(1, C_in, 1, 1, 1) - self.mean1.reshape(1, C_in, 1, 1, 1) * s1
        y = jnp.maximum(y * s1 + b1, 0.0)
        T_out = T + 2 - k + 1
        yp = jnp.pad(y, ((0, 0), (0, 0), (1, 1), (0, 0), (0, 0)))
        stk = jnp.stack([yp[:, :, kt:kt + T_out] for kt in range(k)], axis=2)  # (N,C_in,k,T_out,V,C)
        conv = jnp.einsum('oik,niktvc->notvc', self.weight[..., 0, 0], stk) \
            + self.bias.reshape(1, C_out, 1, 1, 1)
        s2 = (self.gamma2 / jnp.sqrt(self.var2 + _EPS)).reshape(1, C_out, 1, 1, 1)
        b2 = self.beta2.reshape(1, C_out, 1, 1, 1) - self.mean2.reshape(1, C_out, 1, 1, 1) * s2
        return jnp.maximum(conv * s2 + b2, 0.0)


if __name__ == "__main__":
    N, C_in, C_out, T, V, C = 2, 4, 8, 8, 16, 16
    kernel_size = 3

    key = jax.random.PRNGKey(0)
    kx, ka = jax.random.split(key)
    x = 0.5 * jax.random.normal(kx, (N, C_in, T, V, C), jnp.float32)
    A = 0.5 * jax.random.normal(ka, (N, T, 2, V, V), jnp.float32)   # A[:,:,0]=origin, A[:,:,1]=dest

    model = DGCNPallas(C_in, C_out, kernel_size, is_A_OD=True)
    fwd = jax.jit(model.__call__)
    out = jax.block_until_ready(fwd(x, A))
    assert out.shape == (N, C_out, T, V, C), out.shape

    ref = jax.block_until_ready(model.reference(x, A))
    # bf16 MXU operands, f32 accumulation / BN / ReLU -> 5e-2 tolerance.
    np.testing.assert_allclose(np.asarray(out), np.asarray(ref), rtol=5e-2, atol=5e-2)

    print("KERNEL_OK")
</pallas_src>

<mosaic_0001>
module attributes {stable_mosaic.version = 11 : i64} {
  func.func @kernel(%arg0: i32, %arg1: memref<1x64xf32, #tpu.memory_space<vmem>>, %arg2: memref<1x64xf32, #tpu.memory_space<vmem>>, %arg3: memref<1x128xf32, #tpu.memory_space<vmem>>, %arg4: memref<3x64x128xbf16, #tpu.memory_space<vmem>>, %arg5: memref<1x128x64xbf16, #tpu.memory_space<vmem>>, %arg6: memref<1x128x128xbf16, #tpu.memory_space<vmem>>, %arg7: memref<1x8x64x64xbf16, #tpu.memory_space<vmem>>, %arg8: memref<1x128x128xf32, #tpu.memory_space<vmem>>, %arg9: memref<160x64xbf16, #tpu.memory_space<vmem>>) attributes {dimension_semantics = [#tpu.dimension_semantics<parallel>], iteration_bounds = array<i64: 2>, scalar_prefetch = 0 : i64, scratch_operands = 1 : i64, tpu.core_type = #tpu.core_type<tc>, window_params = [{pipeline_mode = #tpu.pipeline_mode<synchronous>, transform_indices = @transform_0, window_bounds = array<i64: 1, 64>}, {pipeline_mode = #tpu.pipeline_mode<synchronous>, transform_indices = @transform_1, window_bounds = array<i64: 1, 64>}, {pipeline_mode = #tpu.pipeline_mode<synchronous>, transform_indices = @transform_2, window_bounds = array<i64: 1, 128>}, {pipeline_mode = #tpu.pipeline_mode<synchronous>, transform_indices = @transform_3, window_bounds = array<i64: 3, 64, 128>}, {transform_indices = @transform_4, window_bounds = array<i64: 1, 128, 64>}, {transform_indices = @transform_5, window_bounds = array<i64: 1, 128, 128>}, {transform_indices = @transform_6, window_bounds = array<i64: 1, 8, 64, 64>}, {transform_indices = @transform_7, window_bounds = array<i64: 1, 128, 128>}]} {
    %c0 = arith.constant 0 : index
    %c0_0 = arith.constant 0 : index
    %c0_1 = arith.constant 0 : index
    %0 = vector.load %arg6[%c0, %c0_0, %c0_1] : memref<1x128x128xbf16, #tpu.memory_space<vmem>>, vector<1x128x128xbf16>
    %1 = vector.shape_cast %0 : vector<1x128x128xbf16> to vector<128x128xbf16>
    %c0_2 = arith.constant 0 : index
    %c0_3 = arith.constant 0 : index
    %c0_4 = arith.constant 0 : index
    %2 = vector.load %arg5[%c0_2, %c0_3, %c0_4] : memref<1x128x64xbf16, #tpu.memory_space<vmem>>, vector<1x128x64xbf16>
    %3 = vector.shape_cast %2 : vector<1x128x64xbf16> to vector<128x64xbf16>
    %cst = arith.constant dense<0.000000e+00> : vector<128x64xf32>
    %4 = tpu.matmul %1, %3, %cst {dimension_numbers = #tpu.dot_dimension_numbers<[1], [0], [0], [1], [0, 0, 1, 1], [], []>} : vector<128x128xbf16>, vector<128x64xbf16>, vector<128x64xf32> -> vector<128x64xf32>
    %5 = arith.truncf %4 : vector<128x64xf32> to vector<128x64xbf16>
    %c0_5 = arith.constant 0 : index
    %c0_6 = arith.constant 0 : index
    %6 = vector.load %arg1[%c0_5, %c0_6] : memref<1x64xf32, #tpu.memory_space<vmem>>, vector<1x64xf32>
    %7 = vector.shape_cast %6 : vector<1x64xf32> to vector<1x64xf32>
    %8 = vector.broadcast %7 : vector<1x64xf32> to vector<16x64xf32>
    %c0_7 = arith.constant 0 : index
    %c0_8 = arith.constant 0 : index
    %9 = vector.load %arg2[%c0_7, %c0_8] : memref<1x64xf32, #tpu.memory_space<vmem>>, vector<1x64xf32>
    %10 = vector.shape_cast %9 : vector<1x64xf32> to vector<1x64xf32>
    %11 = vector.broadcast %10 : vector<1x64xf32> to vector<16x64xf32>
    %cst_9 = arith.constant 0.000000e+00 : bf16
    %12 = vector.broadcast %cst_9 : bf16 to vector<16x64xbf16>
    %c0_10 = arith.constant 0 : index
    %c0_11 = arith.constant 0 : index
    %13 = vector.load %arg9[%c0_10, %c0_11] : memref<160x64xbf16, #tpu.memory_space<vmem>>, vector<16x64xbf16>
    tpu.vector_store %arg9[%c0_10, %c0_11], %12 {strides = array<i32>} : memref<160x64xbf16, #tpu.memory_space<vmem>>, vector<16x64xbf16>,
    %c144 = arith.constant 144 : index
    %c0_12 = arith.constant 0 : index
    %14 = vector.load %arg9[%c144, %c0_12] : memref<160x64xbf16, #tpu.memory_space<vmem>>, vector<16x64xbf16>
    tpu.vector_store %arg9[%c144, %c0_12], %12 {strides = array<i32>} : memref<160x64xbf16, #tpu.memory_space<vmem>>, vector<16x64xbf16>,
    %15 = vector.extract_strided_slice %5 {offsets = [0, 0], sizes = [16, 64], strides = [1, 1]} : vector<128x64xbf16> to vector<16x64xbf16>
    %c0_13 = arith.constant 0 : index
    %c0_14 = arith.constant 0 : index
    %c0_15 = arith.constant 0 : index
    %c0_16 = arith.constant 0 : index
    %16 = vector.load %arg7[%c0_13, %c0_14, %c0_15, %c0_16] : memref<1x8x64x64xbf16, #tpu.memory_space<vmem>>, vector<1x1x64x64xbf16>
    %17 = vector.shape_cast %16 : vector<1x1x64x64xbf16> to vector<64x64xbf16>
    %cst_17 = arith.constant dense<0.000000e+00> : vector<16x64xf32>
    %18 = tpu.matmul %15, %17, %cst_17 {dimension_numbers = #tpu.dot_dimension_numbers<[1], [0], [0], [1], [0, 0, 1, 1], [], []>} : vector<16x64xbf16>, vector<64x64xbf16>, vector<16x64xf32> -> vector<16x64xf32>
    %19 = arith.mulf %18, %8 : vector<16x64xf32>
    %20 = arith.addf %19, %11 : vector<16x64xf32>
    %cst_18 = arith.constant 0.000000e+00 : f32
    %21 = vector.broadcast %cst_18 : f32 to vector<16x64xf32>
    %22 = arith.maximumf %20, %21 : vector<16x64xf32>
    %23 = arith.truncf %22 : vector<16x64xf32> to vector<16x64xbf16>
    %c16 = arith.constant 16 : index
    %c0_19 = arith.constant 0 : index
    %24 = vector.load %arg9[%c16, %c0_19] : memref<160x64xbf16, #tpu.memory_space<vmem>>, vector<16x64xbf16>
    tpu.vector_store %arg9[%c16, %c0_19], %23 {strides = array<i32>} : memref<160x64xbf16, #tpu.memory_space<vmem>>, vector<16x64xbf16>,
    %25 = vector.extract_strided_slice %5 {offsets = [16, 0], sizes = [16, 64], strides = [1, 1]} : vector<128x64xbf16> to vector<16x64xbf16>
    %c0_20 = arith.constant 0 : index
    %c1 = arith.constant 1 : index
    %c0_21 = arith.constant 0 : index
    %c0_22 = arith.constant 0 : index
    %26 = vector.load %arg7[%c0_20, %c1, %c0_21, %c0_22] : memref<1x8x64x64xbf16, #tpu.memory_space<vmem>>, vector<1x1x64x64xbf16>
    %27 = vector.shape_cast %26 : vector<1x1x64x64xbf16> to vector<64x64xbf16>
    %cst_23 = arith.constant dense<0.000000e+00> : vector<16x64xf32>
    %28 = tpu.matmul %25, %27, %cst_23 {dimension_numbers = #tpu.dot_dimension_numbers<[1], [0], [0], [1], [0, 0, 1, 1], [], []>} : vector<16x64xbf16>, vector<64x64xbf16>, vector<16x64xf32> -> vector<16x64xf32>
    %29 = arith.mulf %28, %8 : vector<16x64xf32>
    %30 = arith.addf %29, %11 : vector<16x64xf32>
    %cst_24 = arith.constant 0.000000e+00 : f32
    %31 = vector.broadcast %cst_24 : f32 to vector<16x64xf32>
    %32 = arith.maximumf %30, %31 : vector<16x64xf32>
    %33 = arith.truncf %32 : vector<16x64xf32> to vector<16x64xbf16>
    %c32 = arith.constant 32 : index
    %c0_25 = arith.constant 0 : index
    %34 = vector.load %arg9[%c32, %c0_25] : memref<160x64xbf16, #tpu.memory_space<vmem>>, vector<16x64xbf16>
    tpu.vector_store %arg9[%c32, %c0_25], %33 {strides = array<i32>} : memref<160x64xbf16, #tpu.memory_space<vmem>>, vector<16x64xbf16>,
    %35 = vector.extract_strided_slice %5 {offsets = [32, 0], sizes = [16, 64], strides = [1, 1]} : vector<128x64xbf16> to vector<16x64xbf16>
    %c0_26 = arith.constant 0 : index
    %c2 = arith.constant 2 : index
    %c0_27 = arith.constant 0 : index
    %c0_28 = arith.constant 0 : index
    %36 = vector.load %arg7[%c0_26, %c2, %c0_27, %c0_28] : memref<1x8x64x64xbf16, #tpu.memory_space<vmem>>, vector<1x1x64x64xbf16>
    %37 = vector.shape_cast %36 : vector<1x1x64x64xbf16> to vector<64x64xbf16>
    %cst_29 = arith.constant dense<0.000000e+00> : vector<16x64xf32>
    %38 = tpu.matmul %35, %37, %cst_29 {dimension_numbers = #tpu.dot_dimension_numbers<[1], [0], [0], [1], [0, 0, 1, 1], [], []>} : vector<16x64xbf16>, vector<64x64xbf16>, vector<16x64xf32> -> vector<16x64xf32>
    %39 = arith.mulf %38, %8 : vector<16x64xf32>
    %40 = arith.addf %39, %11 : vector<16x64xf32>
    %cst_30 = arith.constant 0.000000e+00 : f32
    %41 = vector.broadcast %cst_30 : f32 to vector<16x64xf32>
    %42 = arith.maximumf %40, %41 : vector<16x64xf32>
    %43 = arith.truncf %42 : vector<16x64xf32> to vector<16x64xbf16>
    %c48 = arith.constant 48 : index
    %c0_31 = arith.constant 0 : index
    %44 = vector.load %arg9[%c48, %c0_31] : memref<160x64xbf16, #tpu.memory_space<vmem>>, vector<16x64xbf16>
    tpu.vector_store %arg9[%c48, %c0_31], %43 {strides = array<i32>} : memref<160x64xbf16, #tpu.memory_space<vmem>>, vector<16x64xbf16>,
    %45 = vector.extract_strided_slice %5 {offsets = [48, 0], sizes = [16, 64], strides = [1, 1]} : vector<128x64xbf16> to vector<16x64xbf16>
    %c0_32 = arith.constant 0 : index
    %c3 = arith.constant 3 : index
    %c0_33 = arith.constant 0 : index
    %c0_34 = arith.constant 0 : index
    %46 = vector.load %arg7[%c0_32, %c3, %c0_33, %c0_34] : memref<1x8x64x64xbf16, #tpu.memory_space<vmem>>, vector<1x1x64x64xbf16>
    %47 = vector.shape_cast %46 : vector<1x1x64x64xbf16> to vector<64x64xbf16>
    %cst_35 = arith.constant dense<0.000000e+00> : vector<16x64xf32>
    %48 = tpu.matmul %45, %47, %cst_35 {dimension_numbers = #tpu.dot_dimension_numbers<[1], [0], [0], [1], [0, 0, 1, 1], [], []>} : vector<16x64xbf16>, vector<64x64xbf16>, vector<16x64xf32> -> vector<16x64xf32>
    %49 = arith.mulf %48, %8 : vector<16x64xf32>
    %50 = arith.addf %49, %11 : vector<16x64xf32>
    %cst_36 = arith.constant 0.000000e+00 : f32
    %51 = vector.broadcast %cst_36 : f32 to vector<16x64xf32>
    %52 = arith.maximumf %50, %51 : vector<16x64xf32>
    %53 = arith.truncf %52 : vector<16x64xf32> to vector<16x64xbf16>
    %c64 = arith.constant 64 : index
    %c0_37 = arith.constant 0 : index
    %54 = vector.load %arg9[%c64, %c0_37] : memref<160x64xbf16, #tpu.memory_space<vmem>>, vector<16x64xbf16>
    tpu.vector_store %arg9[%c64, %c0_37], %53 {strides = array<i32>} : memref<160x64xbf16, #tpu.memory_space<vmem>>, vector<16x64xbf16>,
    %55 = vector.extract_strided_slice %5 {offsets = [64, 0], sizes = [16, 64], strides = [1, 1]} : vector<128x64xbf16> to vector<16x64xbf16>
    %c0_38 = arith.constant 0 : index
    %c4 = arith.constant 4 : index
    %c0_39 = arith.constant 0 : index
    %c0_40 = arith.constant 0 : index
    %56 = vector.load %arg7[%c0_38, %c4, %c0_39, %c0_40] : memref<1x8x64x64xbf16, #tpu.memory_space<vmem>>, vector<1x1x64x64xbf16>
    %57 = vector.shape_cast %56 : vector<1x1x64x64xbf16> to vector<64x64xbf16>
    %cst_41 = arith.constant dense<0.000000e+00> : vector<16x64xf32>
    %58 = tpu.matmul %55, %57, %cst_41 {dimension_numbers = #tpu.dot_dimension_numbers<[1], [0], [0], [1], [0, 0, 1, 1], [], []>} : vector<16x64xbf16>, vector<64x64xbf16>, vector<16x64xf32> -> vector<16x64xf32>
    %59 = arith.mulf %58, %8 : vector<16x64xf32>
    %60 = arith.addf %59, %11 : vector<16x64xf32>
    %cst_42 = arith.constant 0.000000e+00 : f32
    %61 = vector.broadcast %cst_42 : f32 to vector<16x64xf32>
    %62 = arith.maximumf %60, %61 : vector<16x64xf32>
    %63 = arith.truncf %62 : vector<16x64xf32> to vector<16x64xbf16>
    %c80 = arith.constant 80 : index
    %c0_43 = arith.constant 0 : index
    %64 = vector.load %arg9[%c80, %c0_43] : memref<160x64xbf16, #tpu.memory_space<vmem>>, vector<16x64xbf16>
    tpu.vector_store %arg9[%c80, %c0_43], %63 {strides = array<i32>} : memref<160x64xbf16, #tpu.memory_space<vmem>>, vector<16x64xbf16>,
    %65 = vector.extract_strided_slice %5 {offsets = [80, 0], sizes = [16, 64], strides = [1, 1]} : vector<128x64xbf16> to vector<16x64xbf16>
    %c0_44 = arith.constant 0 : index
    %c5 = arith.constant 5 : index
    %c0_45 = arith.constant 0 : index
    %c0_46 = arith.constant 0 : index
    %66 = vector.load %arg7[%c0_44, %c5, %c0_45, %c0_46] : memref<1x8x64x64xbf16, #tpu.memory_space<vmem>>, vector<1x1x64x64xbf16>
    %67 = vector.shape_cast %66 : vector<1x1x64x64xbf16> to vector<64x64xbf16>
    %cst_47 = arith.constant dense<0.000000e+00> : vector<16x64xf32>
    %68 = tpu.matmul %65, %67, %cst_47 {dimension_numbers = #tpu.dot_dimension_numbers<[1], [0], [0], [1], [0, 0, 1, 1], [], []>} : vector<16x64xbf16>, vector<64x64xbf16>, vector<16x64xf32> -> vector<16x64xf32>
    %69 = arith.mulf %68, %8 : vector<16x64xf32>
    %70 = arith.addf %69, %11 : vector<16x64xf32>
    %cst_48 = arith.constant 0.000000e+00 : f32
    %71 = vector.broadcast %cst_48 : f32 to vector<16x64xf32>
    %72 = arith.maximumf %70, %71 : vector<16x64xf32>
    %73 = arith.truncf %72 : vector<16x64xf32> to vector<16x64xbf16>
    %c96 = arith.constant 96 : index
    %c0_49 = arith.constant 0 : index
    %74 = vector.load %arg9[%c96, %c0_49] : memref<160x64xbf16, #tpu.memory_space<vmem>>, vector<16x64xbf16>
    tpu.vector_store %arg9[%c96, %c0_49], %73 {strides = array<i32>} : memref<160x64xbf16, #tpu.memory_space<vmem>>, vector<16x64xbf16>,
    %75 = vector.extract_strided_slice %5 {offsets = [96, 0], sizes = [16, 64], strides = [1, 1]} : vector<128x64xbf16> to vector<16x64xbf16>
    %c0_50 = arith.constant 0 : index
    %c6 = arith.constant 6 : index
    %c0_51 = arith.constant 0 : index
    %c0_52 = arith.constant 0 : index
    %76 = vector.load %arg7[%c0_50, %c6, %c0_51, %c0_52] : memref<1x8x64x64xbf16, #tpu.memory_space<vmem>>, vector<1x1x64x64xbf16>
    %77 = vector.shape_cast %76 : vector<1x1x64x64xbf16> to vector<64x64xbf16>
    %cst_53 = arith.constant dense<0.000000e+00> : vector<16x64xf32>
    %78 = tpu.matmul %75, %77, %cst_53 {dimension_numbers = #tpu.dot_dimension_numbers<[1], [0], [0], [1], [0, 0, 1, 1], [], []>} : vector<16x64xbf16>, vector<64x64xbf16>, vector<16x64xf32> -> vector<16x64xf32>
    %79 = arith.mulf %78, %8 : vector<16x64xf32>
    %80 = arith.addf %79, %11 : vector<16x64xf32>
    %cst_54 = arith.constant 0.000000e+00 : f32
    %81 = vector.broadcast %cst_54 : f32 to vector<16x64xf32>
    %82 = arith.maximumf %80, %81 : vector<16x64xf32>
    %83 = arith.truncf %82 : vector<16x64xf32> to vector<16x64xbf16>
    %c112 = arith.constant 112 : index
    %c0_55 = arith.constant 0 : index
    %84 = vector.load %arg9[%c112, %c0_55] : memref<160x64xbf16, #tpu.memory_space<vmem>>, vector<16x64xbf16>
    tpu.vector_store %arg9[%c112, %c0_55], %83 {strides = array<i32>} : memref<160x64xbf16, #tpu.memory_space<vmem>>, vector<16x64xbf16>,
    %85 = vector.extract_strided_slice %5 {offsets = [112, 0], sizes = [16, 64], strides = [1, 1]} : vector<128x64xbf16> to vector<16x64xbf16>
    %c0_56 = arith.constant 0 : index
    %c7 = arith.constant 7 : index
    %c0_57 = arith.constant 0 : index
    %c0_58 = arith.constant 0 : index
    %86 = vector.load %arg7[%c0_56, %c7, %c0_57, %c0_58] : memref<1x8x64x64xbf16, #tpu.memory_space<vmem>>, vector<1x1x64x64xbf16>
    %87 = vector.shape_cast %86 : vector<1x1x64x64xbf16> to vector<64x64xbf16>
    %cst_59 = arith.constant dense<0.000000e+00> : vector<16x64xf32>
    %88 = tpu.matmul %85, %87, %cst_59 {dimension_numbers = #tpu.dot_dimension_numbers<[1], [0], [0], [1], [0, 0, 1, 1], [], []>} : vector<16x64xbf16>, vector<64x64xbf16>, vector<16x64xf32> -> vector<16x64xf32>
    %89 = arith.mulf %88, %8 : vector<16x64xf32>
    %90 = arith.addf %89, %11 : vector<16x64xf32>
    %cst_60 = arith.constant 0.000000e+00 : f32
    %91 = vector.broadcast %cst_60 : f32 to vector<16x64xf32>
    %92 = arith.maximumf %90, %91 : vector<16x64xf32>
    %93 = arith.truncf %92 : vector<16x64xf32> to vector<16x64xbf16>
    %c128 = arith.constant 128 : index
    %c0_61 = arith.constant 0 : index
    %94 = vector.load %arg9[%c128, %c0_61] : memref<160x64xbf16, #tpu.memory_space<vmem>>, vector<16x64xbf16>
    tpu.vector_store %arg9[%c128, %c0_61], %93 {strides = array<i32>} : memref<160x64xbf16, #tpu.memory_space<vmem>>, vector<16x64xbf16>,
    %c0_62 = arith.constant 0 : index
    %c0_63 = arith.constant 0 : index
    %95 = vector.load %arg9[%c0_62, %c0_63] : memref<160x64xbf16, #tpu.memory_space<vmem>>, vector<128x64xbf16>
    %c0_64 = arith.constant 0 : index
    %c0_65 = arith.constant 0 : index
    %c0_66 = arith.constant 0 : index
    %96 = vector.load %arg4[%c0_64, %c0_65, %c0_66] : memref<3x64x128xbf16, #tpu.memory_space<vmem>>, vector<1x64x128xbf16>
    %97 = vector.shape_cast %96 : vector<1x64x128xbf16> to vector<64x128xbf16>
    %cst_67 = arith.constant dense<0.000000e+00> : vector<128x128xf32>
    %98 = tpu.matmul %95, %97, %cst_67 {dimension_numbers = #tpu.dot_dimension_numbers<[1], [0], [0], [1], [0, 0, 1, 1], [], []>} : vector<128x64xbf16>, vector<64x128xbf16>, vector<128x128xf32> -> vector<128x128xf32>
    %c16_68 = arith.constant 16 : index
    %c0_69 = arith.constant 0 : index
    %99 = vector.load %arg9[%c16_68, %c0_69] : memref<160x64xbf16, #tpu.memory_space<vmem>>, vector<128x64xbf16>
    %c1_70 = arith.constant 1 : index
    %c0_71 = arith.constant 0 : index
    %c0_72 = arith.constant 0 : index
    %100 = vector.load %arg4[%c1_70, %c0_71, %c0_72] : memref<3x64x128xbf16, #tpu.memory_space<vmem>>, vector<1x64x128xbf16>
    %101 = vector.shape_cast %100 : vector<1x64x128xbf16> to vector<64x128xbf16>
    %cst_73 = arith.constant dense<0.000000e+00> : vector<128x128xf32>
    %102 = tpu.matmul %99, %101, %cst_73 {dimension_numbers = #tpu.dot_dimension_numbers<[1], [0], [0], [1], [0, 0, 1, 1], [], []>} : vector<128x64xbf16>, vector<64x128xbf16>, vector<128x128xf32> -> vector<128x128xf32>
    %103 = arith.addf %98, %102 : vector<128x128xf32>
    %c32_74 = arith.constant 32 : index
    %c0_75 = arith.constant 0 : index
    %104 = vector.load %arg9[%c32_74, %c0_75] : memref<160x64xbf16, #tpu.memory_space<vmem>>, vector<128x64xbf16>
    %c2_76 = arith.constant 2 : index
    %c0_77 = arith.constant 0 : index
    %c0_78 = arith.constant 0 : index
    %105 = vector.load %arg4[%c2_76, %c0_77, %c0_78] : memref<3x64x128xbf16, #tpu.memory_space<vmem>>, vector<1x64x128xbf16>
    %106 = vector.shape_cast %105 : vector<1x64x128xbf16> to vector<64x128xbf16>
    %cst_79 = arith.constant dense<0.000000e+00> : vector<128x128xf32>
    %107 = tpu.matmul %104, %106, %cst_79 {dimension_numbers = #tpu.dot_dimension_numbers<[1], [0], [0], [1], [0, 0, 1, 1], [], []>} : vector<128x64xbf16>, vector<64x128xbf16>, vector<128x128xf32> -> vector<128x128xf32>
    %108 = arith.addf %103, %107 : vector<128x128xf32>
    %c0_80 = arith.constant 0 : index
    %c0_81 = arith.constant 0 : index
    %109 = vector.load %arg3[%c0_80, %c0_81] : memref<1x128xf32, #tpu.memory_space<vmem>>, vector<1x128xf32>
    %110 = vector.broadcast %109 : vector<1x128xf32> to vector<128x128xf32>
    %111 = arith.addf %108, %110 : vector<128x128xf32>
    %cst_82 = arith.constant 0.000000e+00 : f32
    %112 = vector.broadcast %cst_82 : f32 to vector<128x128xf32>
    %113 = arith.maximumf %111, %112 : vector<128x128xf32>
    %c0_83 = arith.constant 0 : index
    %c0_84 = arith.constant 0 : index
    %c0_85 = arith.constant 0 : index
    %114 = vector.load %arg8[%c0_83, %c0_84, %c0_85] : memref<1x128x128xf32, #tpu.memory_space<vmem>>, vector<1x128x128xf32>
    %115 = vector.shape_cast %114 : vector<1x128x128xf32> to vector<128x128xf32>
    %116 = vector.shape_cast %113 : vector<128x128xf32> to vector<1x128x128xf32>
    tpu.vector_store %arg8[%c0_83, %c0_84, %c0_85], %116 {strides = array<i32>} : memref<1x128x128xf32, #tpu.memory_space<vmem>>, vector<1x128x128xf32>,
    return
  }
  func.func @transform_0(%arg0: i32) -> (i32, i32) {
    %c0_i32 = arith.constant 0 : i32
    %c0_i32_0 = arith.constant 0 : i32
    %c0_i32_1 = arith.constant 0 : i32
    return %c0_i32, %c0_i32_0 : i32, i32
  }
  func.func @transform_1(%arg0: i32) -> (i32, i32) {
    %c0_i32 = arith.constant 0 : i32
    %c0_i32_0 = arith.constant 0 : i32
    %c0_i32_1 = arith.constant 0 : i32
    return %c0_i32, %c0_i32_0 : i32, i32
  }
  func.func @transform_2(%arg0: i32) -> (i32, i32) {
    %c0_i32 = arith.constant 0 : i32
    %c0_i32_0 = arith.constant 0 : i32
    %c0_i32_1 = arith.constant 0 : i32
    return %c0_i32, %c0_i32_0 : i32, i32
  }
  func.func @transform_3(%arg0: i32) -> (i32, i32, i32) {
    %c0_i32 = arith.constant 0 : i32
    %c0_i32_0 = arith.constant 0 : i32
    %c0_i32_1 = arith.constant 0 : i32
    %c0_i32_2 = arith.constant 0 : i32
    return %c0_i32, %c0_i32_0, %c0_i32_1 : i32, i32, i32
  }
  func.func @transform_4(%arg0: i32) -> (i32, i32, i32) {
    %c0_i32 = arith.constant 0 : i32
    %c0_i32_0 = arith.constant 0 : i32
    %c0_i32_1 = arith.constant 0 : i32
    return %arg0, %c0_i32, %c0_i32_0 : i32, i32, i32
  }
  func.func @transform_5(%arg0: i32) -> (i32, i32, i32) {
    %c0_i32 = arith.constant 0 : i32
    %c0_i32_0 = arith.constant 0 : i32
    %c0_i32_1 = arith.constant 0 : i32
    return %arg0, %c0_i32, %c0_i32_0 : i32, i32, i32
  }
  func.func @transform_6(%arg0: i32) -> (i32, i32, i32, i32) {
    %c0_i32 = arith.constant 0 : i32
    %c0_i32_0 = arith.constant 0 : i32
    %c0_i32_1 = arith.constant 0 : i32
    %c0_i32_2 = arith.constant 0 : i32
    return %arg0, %c0_i32, %c0_i32_0, %c0_i32_1 : i32, i32, i32, i32
  }
  func.func @transform_7(%arg0: i32) -> (i32, i32, i32) {
    %c0_i32 = arith.constant 0 : i32
    %c0_i32_0 = arith.constant 0 : i32
    %c0_i32_1 = arith.constant 0 : i32
    return %arg0, %c0_i32, %c0_i32_0 : i32, i32, i32
  }
}

</mosaic_0001>

<llo_original>
// kernel: a_call__.1
$region0: #{a_call__.1}
  #allocation0 [shape = 'u32[]', space=smem, size = 0x4, offset = 0x4, fixed_abs, tag = 'smem constant byte address 0x4 - core index']
  #allocation1 [shape = 'u32[144,128]{1,0:T(1,128)}', space=vmem, size = 0x12000, scoped, tag = 'internal scratch']
  #allocation2 [shape = 'bf16[160,64]{1,0:T(16,128)(2,1)}', space=vmem, size = 0xa000, scoped, tag = 'scratch operand']
  %s0 = inlined_call_operand.vmem [shape: f32[1,64], index: 0, kind: input, shape index: {}]
  %s1 = inlined_call_operand.vmem [shape: f32[1,64], index: 1, kind: input, shape index: {}]
  %s2 = inlined_call_operand.vmem [shape: f32[1,128], index: 2, kind: input, shape index: {}]
  %s3 = inlined_call_operand.vmem [shape: bf16[3,64,128], index: 3, kind: input, shape index: {}]
  %s4 = inlined_call_operand.vmem [shape: bf16[2,128,64], index: 4, kind: input, shape index: {}]
  %s5 = inlined_call_operand.vmem [shape: bf16[2,128,128], index: 5, kind: input, shape index: {}]
  %s6 = inlined_call_operand.vmem [shape: bf16[2,8,64,64], index: 6, kind: input, shape index: {}]
  %s7 = inlined_call_operand.vmem [shape: f32[2,128,128], index: 7, kind: output, shape index: {}]
  %s8 = sld [smem:[#allocation0]]
  $region61: #{a_call__.1} parent=0
    _
  %s10 = ssub.s32 1, %s8
  %s11 = scalar_select 0, %s10, %s8
  loop: start=0, step=1, limit=4
  $region2: #{a_call__.1} parent=0 // loop_pre_header
    _
  $region3: #{a_call__.1} parent=0 // loop_header
    %s13 = sphi 0, %s17
    %p14 = scmp.ge.s32.totalorder %s13, 4
    %s21 = sphi 0, %s21
    %s23 = sphi 0, %s21
    %s24 = sphi 0, %s23
    %s38 = sphi 0, %s24
    %s42 = sphi 0, %s42
    %s44 = sphi 0, %s42
    %s45 = sphi 0, %s44
    %s59 = sphi 0, %s45
    %s63 = sphi 0, %s63
    %s65 = sphi 0, %s63
    %s66 = sphi 0, %s65
    %s80 = sphi 0, %s66
    %s84 = sphi 0, %s84
    %s86 = sphi 0, %s84
    %s87 = sphi 0, %s86
    %s101 = sphi 0, %s87
    %s107 = sphi 0, %s109
    %s110 = sphi 0, %s107
    %s111 = sphi 0, %s110
    %s127 = sphi 0, %s111
    %s133 = sphi 0, %s135
    %s136 = sphi 0, %s133
    %s137 = sphi 0, %s136
    %s153 = sphi 0, %s137
    %s159 = sphi 0, %s161
    %s162 = sphi 0, %s159
    %s163 = sphi 0, %s162
    %s179 = sphi 0, %s163
    %s185 = sphi 0, %s187
    %s188 = sphi 0, %s185
    %s189 = sphi 0, %s188
    %s205 = sphi 0, %s189
  $region4: #{a_call__.1} parent=0 // loop_header_branch
    %16 = sbr.rel (%p14) target = $region8
  $region5: #{a_call__.1} parent=0 // loop_body
    %s18 = ssub.s32 %s13, 1
    %s19 = ssub.s32 %s13, 2
    %s20 = sadd.s32 %s13, 1
    %s22 = sadd.s32 %s21, 1
    %p25 = scmp.eq.s32.totalorder %s13, 1
    %p26 = scmp.ne.s32.totalorder %s21, %s23
    %p27 = scmp.eq.s32.totalorder %s13, 0
    %p28 = por %p26, %p27
    %p29 = scmp.ne.s32.totalorder %s21, %s23
    %p30 = scmp.eq.s32.totalorder %s18, 1
    %p31 = por %p29, %p30
    %p32 = scmp.ne.s32.totalorder %s23, %s24
    %p33 = scmp.eq.s32.totalorder %s18, 0
    %p34 = por %p32, %p33
    %p35 = scmp.ne.s32.totalorder %s23, %s24
    %p36 = scmp.eq.s32.totalorder %s19, 1
    %p37 = por %p35, %p36
    %p39 = scmp.ne.s32.totalorder %s24, %s38
    %p40 = scmp.eq.s32.totalorder %s19, 0
    %p41 = por %p39, %p40
    %s43 = sadd.s32 %s42, 1
    %p46 = scmp.eq.s32.totalorder %s13, 1
    %p47 = scmp.ne.s32.totalorder %s42, %s44
    %p48 = scmp.eq.s32.totalorder %s13, 0
    %p49 = por %p47, %p48
    %p50 = scmp.ne.s32.totalorder %s42, %s44
    %p51 = scmp.eq.s32.totalorder %s18, 1
    %p52 = por %p50, %p51
    %p53 = scmp.ne.s32.totalorder %s44, %s45
    %p54 = scmp.eq.s32.totalorder %s18, 0
    %p55 = por %p53, %p54
    %p56 = scmp.ne.s32.totalorder %s44, %s45
    %p57 = scmp.eq.s32.totalorder %s19, 1
    %p58 = por %p56, %p57
    %p60 = scmp.ne.s32.totalorder %s45, %s59
    %p61 = scmp.eq.s32.totalorder %s19, 0
    %p62 = por %p60, %p61
    %s64 = sadd.s32 %s63, 1
    %p67 = scmp.eq.s32.totalorder %s13, 1
    %p68 = scmp.ne.s32.totalorder %s63, %s65
    %p69 = scmp.eq.s32.totalorder %s13, 0
    %p70 = por %p68, %p69
    %p71 = scmp.ne.s32.totalorder %s63, %s65
    %p72 = scmp.eq.s32.totalorder %s18, 1
    %p73 = por %p71, %p72
    %p74 = scmp.ne.s32.totalorder %s65, %s66
    %p75 = scmp.eq.s32.totalorder %s18, 0
    %p76 = por %p74, %p75
    %p77 = scmp.ne.s32.totalorder %s65, %s66
    %p78 = scmp.eq.s32.totalorder %s19, 1
    %p79 = por %p77, %p78
    %p81 = scmp.ne.s32.totalorder %s66, %s80
    %p82 = scmp.eq.s32.totalorder %s19, 0
    %p83 = por %p81, %p82
    %s85 = sadd.s32 %s84, 1
    %p88 = scmp.eq.s32.totalorder %s13, 1
    %p89 = scmp.ne.s32.totalorder %s84, %s86
    %p90 = scmp.eq.s32.totalorder %s13, 0
    %p91 = por %p89, %p90
    %p92 = scmp.ne.s32.totalorder %s84, %s86
    %p93 = scmp.eq.s32.totalorder %s18, 1
    %p94 = por %p92, %p93
    %p95 = scmp.ne.s32.totalorder %s86, %s87
    %p96 = scmp.eq.s32.totalorder %s18, 0
    %p97 = por %p95, %p96
    %p98 = scmp.ne.s32.totalorder %s86, %s87
    %p99 = scmp.eq.s32.totalorder %s19, 1
    %p100 = por %p98, %p99
    %p102 = scmp.ne.s32.totalorder %s87, %s101
    %p103 = scmp.eq.s32.totalorder %s19, 0
    %p104 = por %p102, %p103
    %s105 = ssub.s32 %s13, %s20
    %p106 = scmp.eq.s32.totalorder %s105, 0
    %s108 = sadd.s32 %s107, 1
    %s109 = scalar_select %p106, %s107, %s108
    %p112 = pneg %p106
    %p113 = scmp.eq.s32.totalorder %s13, 1
    %p114 = por %p112, %p113
    %p115 = scmp.ne.s32.totalorder %s107, %s110
    %p116 = scmp.eq.s32.totalorder %s13, 0
    %p117 = por %p115, %p116
    %p118 = scmp.ne.s32.totalorder %s107, %s110
    %p119 = scmp.eq.s32.totalorder %s18, 1
    %p120 = por %p118, %p119
    %p121 = scmp.ne.s32.totalorder %s110, %s111
    %p122 = scmp.eq.s32.totalorder %s18, 0
    %p123 = por %p121, %p122
    %p124 = scmp.ne.s32.totalorder %s110, %s111
    %p125 = scmp.eq.s32.totalorder %s19, 1
    %p126 = por %p124, %p125
    %p128 = scmp.ne.s32.totalorder %s111, %s127
    %p129 = scmp.eq.s32.totalorder %s19, 0
    %p130 = por %p128, %p129
    %s131 = ssub.s32 %s13, %s20
    %p132 = scmp.eq.s32.totalorder %s131, 0
    %s134 = sadd.s32 %s133, 1
    %s135 = scalar_select %p132, %s133, %s134
    %p138 = pneg %p132
    %p139 = scmp.eq.s32.totalorder %s13, 1
    %p140 = por %p138, %p139
    %p141 = scmp.ne.s32.totalorder %s133, %s136
    %p142 = scmp.eq.s32.totalorder %s13, 0
    %p143 = por %p141, %p142
    %p144 = scmp.ne.s32.totalorder %s133, %s136
    %p145 = scmp.eq.s32.totalorder %s18, 1
    %p146 = por %p144, %p145
    %p147 = scmp.ne.s32.totalorder %s136, %s137
    %p148 = scmp.eq.s32.totalorder %s18, 0
    %p149 = por %p147, %p148
    %p150 = scmp.ne.s32.totalorder %s136, %s137
    %p151 = scmp.eq.s32.totalorder %s19, 1
    %p152 = por %p150, %p151
    %p154 = scmp.ne.s32.totalorder %s137, %s153
    %p155 = scmp.eq.s32.totalorder %s19, 0
    %p156 = por %p154, %p155
    %s157 = ssub.s32 %s13, %s20
    %p158 = scmp.eq.s32.totalorder %s157, 0
    %s160 = sadd.s32 %s159, 1
    %s161 = scalar_select %p158, %s159, %s160
    %p164 = pneg %p158
    %p165 = scmp.eq.s32.totalorder %s13, 1
    %p166 = por %p164, %p165
    %p167 = scmp.ne.s32.totalorder %s159, %s162
    %p168 = scmp.eq.s32.totalorder %s13, 0
    %p169 = por %p167, %p168
    %p170 = scmp.ne.s32.totalorder %s159, %s162
    %p171 = scmp.eq.s32.totalorder %s18, 1
    %p172 = por %p170, %p171
    %p173 = scmp.ne.s32.totalorder %s162, %s163
    %p174 = scmp.eq.s32.totalorder %s18, 0
    %p175 = por %p173, %p174
    %p176 = scmp.ne.s32.totalorder %s162, %s163
    %p177 = scmp.eq.s32.totalorder %s19, 1
    %p178 = por %p176, %p177
    %p180 = scmp.ne.s32.totalorder %s163, %s179
    %p181 = scmp.eq.s32.totalorder %s19, 0
    %p182 = por %p180, %p181
    %s183 = ssub.s32 %s13, %s20
    %p184 = scmp.eq.s32.totalorder %s183, 0
    %s186 = sadd.s32 %s185, 1
    %s187 = scalar_select %p184, %s185, %s186
    %p190 = pneg %p184
    %p191 = scmp.eq.s32.totalorder %s13, 1
    %p192 = por %p190, %p191
    %p193 = scmp.ne.s32.totalorder %s185, %s188
    %p194 = scmp.eq.s32.totalorder %s13, 0
    %p195 = por %p193, %p194
    %p196 = scmp.ne.s32.totalorder %s185, %s188
    %p197 = scmp.eq.s32.totalorder %s18, 1
    %p198 = por %p196, %p197
    %p199 = scmp.ne.s32.totalorder %s188, %s189
    %p200 = scmp.eq.s32.totalorder %s18, 0
    %p201 = por %p199, %p200
    %p202 = scmp.ne.s32.totalorder %s188, %s189
    %p203 = scmp.eq.s32.totalorder %s19, 1
    %p204 = por %p202, %p203
    %p206 = scmp.ne.s32.totalorder %s189, %s205
    %p207 = scmp.eq.s32.totalorder %s19, 0
    %p208 = por %p206, %p207
    %p209 = scmp.le.s32.totalorder 1, %s13
    %p210 = scmp.lt.s32.totalorder %s13, 3
    %p211 = pnand %p209, %p210
    %p212 = pneg %p211
    // Predicated region
    $region9: #{a_call__.1} parent=5 // pred_check
      _
    $region10: #{a_call__.1} parent=5 // pred_check_branch
      %214 = sbr.rel (%p211) target = $region12
    $region11: #{a_call__.1} parent=5 // pred_region
      %s215 = ssub.s32 %s13, 1
      // Predicated region
      $region13: #{a_call__.1} parent=11 // pred_check
        %p216 = pneg %p34
      $region14: #{a_call__.1} parent=11 // pred_check_branch
        %218 = sbr.rel (%p216) target = $region16
      $region15: #{a_call__.1} parent=11 // pred_region
        _
      $region16: #{a_call__.1} parent=11 // pred_fallthru
        _
      // Predicated region
      $region17: #{a_call__.1} parent=11 // pred_check
        %p219 = pneg %p55
      $region18: #{a_call__.1} parent=11 // pred_check_branch
        %221 = sbr.rel (%p219) target = $region20
      $region19: #{a_call__.1} parent=11 // pred_region
        _
      $region20: #{a_call__.1} parent=11 // pred_fallthru
        _
      // Predicated region
      $region21: #{a_call__.1} parent=11 // pred_check
        %p222 = pneg %p76
      $region22: #{a_call__.1} parent=11 // pred_check_branch
        %224 = sbr.rel (%p222) target = $region24
      $region23: #{a_call__.1} parent=11 // pred_region
        _
      $region24: #{a_call__.1} parent=11 // pred_fallthru
        _
      // Predicated region
      $region25: #{a_call__.1} parent=11 // pred_check
        %p225 = pneg %p97
      $region26: #{a_call__.1} parent=11 // pred_check_branch
        %227 = sbr.rel (%p225) target = $region28
      $region27: #{a_call__.1} parent=11 // pred_region
        _
      $region28: #{a_call__.1} parent=11 // pred_fallthru
        _
    $region12: #{a_call__.1} parent=5 // pred_fallthru
      _
    %p228 = scmp.lt.s32.totalorder %s13, 2
    // Predicated region
    $region29: #{a_call__.1} parent=5 // pred_check
      %p229 = pneg %p228
    $region30: #{a_call__.1} parent=5 // pred_check_branch
      %231 = sbr.rel (%p229) target = $region32
    $region31: #{a_call__.1} parent=5 // pred_region
      // Predicated region
      $region33: #{a_call__.1} parent=31 // pred_check
        %p232 = pneg %p117
      $region34: #{a_call__.1} parent=31 // pred_check_branch
        %234 = sbr.rel (%p232) target = $region36
      $region35: #{a_call__.1} parent=31 // pred_region
        %p235 = scmp.lt.s32.totalorder %s13, 1
        %s236 = scalar_select %p235, %s13, 1
        %s237 = smul.addr %s236, 16
        %s238 = smul.addr %s237, 4
        %s239 = scalar_lea.vmem %s4, %s238
      $region36: #{a_call__.1} parent=31 // pred_fallthru
        _
      // Predicated region
      $region37: #{a_call__.1} parent=31 // pred_check
        %p240 = pneg %p143
      $region38: #{a_call__.1} parent=31 // pred_check_branch
        %242 = sbr.rel (%p240) target = $region40
      $region39: #{a_call__.1} parent=31 // pred_region
        %p243 = scmp.lt.s32.totalorder %s13, 1
        %s244 = scalar_select %p243, %s13, 1
        %s245 = smul.addr %s244, 16
        %s246 = smul.addr %s245, 4
        %s247 = scalar_lea.vmem %s5, %s246
      $region40: #{a_call__.1} parent=31 // pred_fallthru
        _
      // Predicated region
      $region41: #{a_call__.1} parent=31 // pred_check
        %p248 = pneg %p169
      $region42: #{a_call__.1} parent=31 // pred_check_branch
        %250 = sbr.rel (%p248) target = $region44
      $region43: #{a_call__.1} parent=31 // pred_region
        %p251 = scmp.lt.s32.totalorder %s13, 1
        %s252 = scalar_select %p251, %s13, 1
        %s253 = smul.addr %s252, 64
        %s254 = smul.addr %s253, 4
        %s255 = scalar_lea.vmem %s6, %s254
      $region44: #{a_call__.1} parent=31 // pred_fallthru
        _
    $region32: #{a_call__.1} parent=5 // pred_fallthru
      _
    %p256 = scmp.le.s32.totalorder 1, %s13
    %p257 = scmp.lt.s32.totalorder %s13, 3
    %p258 = pnand %p256, %p257
    %p259 = pneg %p258
    // Predicated region
    $region45: #{a_call__.1} parent=5 // pred_check
      _
    $region46: #{a_call__.1} parent=5 // pred_check_branch
      %261 = sbr.rel (%p258) target = $region48
    $region47: #{a_call__.1} parent=5 // pred_region
      %s262 = ssub.s32 %s13, 1
      %p263 = pneg %p34
      %p264 = pneg %p31
      %p265 = pneg %p55
      %p266 = pneg %p52
      %p267 = pneg %p76
      %p268 = pneg %p73
      %p269 = pneg %p97
      %p270 = pneg %p94
      %p271 = scmp.lt.s32.totalorder %s18, 1
      %s272 = scalar_select %p271, %s18, 1
      %s273 = smul.addr %s272, 16
      %s274 = smul.addr %s273, 4
      %s275 = scalar_lea.vmem %s4, %s274
      %p276 = pneg %p123
      %p277 = pneg %p120
      %p278 = scmp.lt.s32.totalorder %s18, 1
      %s279 = scalar_select %p278, %s18, 1
      %s280 = smul.addr %s279, 16
      %s281 = smul.addr %s280, 4
      %s282 = scalar_lea.vmem %s5, %s281
      %p283 = pneg %p149
      %p284 = pneg %p146
      %p285 = scmp.lt.s32.totalorder %s18, 1
      %s286 = scalar_select %p285, %s18, 1
      %s287 = smul.addr %s286, 64
      %s288 = smul.addr %s287, 4
      %s289 = scalar_lea.vmem %s6, %s288
      %p290 = pneg %p175
      %p291 = pneg %p172
      %p292 = pneg %p201
      %p293 = pneg %p198
      %p294 = scmp.lt.s32.totalorder %s18, 1
      %s295 = scalar_select %p294, %s18, 1
      %s296 = smul.addr %s295, 16
      %s297 = smul.addr %s296, 8
      %s298 = scalar_lea.vmem %s7, %s297
      %p299 = scmp.lt.s32.totalorder %s18, 1
      %s300 = scalar_select %p299, %s18, 1
      %s301 = smul.addr %s300, 16
      %s302 = smul.addr %s301, 4
      %s303 = scalar_lea.vmem %s4, %s302
      %p304 = scmp.lt.s32.totalorder %s18, 1
      %s305 = scalar_select %p304, %s18, 1
      %s306 = smul.addr %s305, 16
      %s307 = smul.addr %s306, 4
      %s308 = scalar_lea.vmem %s5, %s307
      %p309 = scmp.lt.s32.totalorder %s18, 1
      %s310 = scalar_select %p309, %s18, 1
      %s311 = smul.addr %s310, 64
      %s312 = smul.addr %s311, 4
      %s313 = scalar_lea.vmem %s6, %s312
      %p314 = scmp.lt.s32.totalorder %s18, 1
      %s315 = scalar_select %p314, %s18, 1
      %s316 = smul.addr %s315, 16
      %s317 = smul.addr %s316, 8
      %s318 = scalar_lea.vmem %s7, %s317
      %v320 = vld [vmem:[%s308] sm:$0xf]
      %v321 = vld [vmem:[%s308 + $0x4] sm:$0xf]
      %v322 = vld [vmem:[%s308 + $0x8] sm:$0xf]
      %v323 = vld [vmem:[%s308 + $0xc] sm:$0xf]
      %v324 = vld [vmem:[%s308 + $0x10] sm:$0xf]
      %v325 = vld [vmem:[%s308 + $0x14] sm:$0xf]
      %v326 = vld [vmem:[%s308 + $0x18] sm:$0xf]
      %v327 = vld [vmem:[%s308 + $0x1c] sm:$0xf]
      %v328 = vld [vmem:[%s308 + $0x20] sm:$0xf]
      %v329 = vld [vmem:[%s308 + $0x24] sm:$0xf]
      %v330 = vld [vmem:[%s308 + $0x28] sm:$0xf]
      %v331 = vld [vmem:[%s308 + $0x2c] sm:$0xf]
      %v332 = vld [vmem:[%s308 + $0x30] sm:$0xf]
      %v333 = vld [vmem:[%s308 + $0x34] sm:$0xf]
      %v334 = vld [vmem:[%s308 + $0x38] sm:$0xf]
      %v335 = vld [vmem:[%s308 + $0x3c] sm:$0xf]
      %v336 = vld [vmem:[%s303] sm:$0xf]
      %v337 = vld [vmem:[%s303 + $0x4] sm:$0xf]
      %v338 = vld [vmem:[%s303 + $0x8] sm:$0xf]
      %v339 = vld [vmem:[%s303 + $0xc] sm:$0xf]
      %v340 = vld [vmem:[%s303 + $0x10] sm:$0xf]
      %v341 = vld [vmem:[%s303 + $0x14] sm:$0xf]
      %v342 = vld [vmem:[%s303 + $0x18] sm:$0xf]
      %v343 = vld [vmem:[%s303 + $0x1c] sm:$0xf]
      %v344 = vld [vmem:[%s303 + $0x20] sm:$0xf]
      %v345 = vld [vmem:[%s303 + $0x24] sm:$0xf]
      %v346 = vld [vmem:[%s303 + $0x28] sm:$0xf]
      %v347 = vld [vmem:[%s303 + $0x2c] sm:$0xf]
      %v348 = vld [vmem:[%s303 + $0x30] sm:$0xf]
      %v349 = vld [vmem:[%s303 + $0x34] sm:$0xf]
      %v350 = vld [vmem:[%s303 + $0x38] sm:$0xf]
      %v351 = vld [vmem:[%s303 + $0x3c] sm:$0xf]
      %v368 = vunpack.c.l.b16 %v320
      %v369 = vunpack.c.l.b16 %v321
      %v370 = vunpack.c.l.b16 %v322
      %v371 = vunpack.c.l.b16 %v323
      %v372 = vunpack.c.l.b16 %v324
      %v373 = vunpack.c.l.b16 %v325
      %v374 = vunpack.c.l.b16 %v326
      %v375 = vunpack.c.l.b16 %v327
      %v376 = vunpack.c.l.b16 %v328
      %v377 = vunpack.c.l.b16 %v329
      %v378 = vunpack.c.l.b16 %v330
      %v379 = vunpack.c.l.b16 %v331
      %v380 = vunpack.c.l.b16 %v332
      %v381 = vunpack.c.l.b16 %v333
      %v382 = vunpack.c.l.b16 %v334
      %v383 = vunpack.c.l.b16 %v335
      %v384 = vpack.c.b16 %v369, %v368
      %v385 = vpack.c.b16 %v371, %v370
      %v386 = vpack.c.b16 %v373, %v372
      %v387 = vpack.c.b16 %v375, %v374
      %v388 = vpack.c.b16 %v377, %v376
      %v389 = vpack.c.b16 %v379, %v378
      %v390 = vpack.c.b16 %v381, %v380
      %v391 = vpack.c.b16 %v383, %v382
      %v416 = vunpack.c.l.b16 %v336
      %v417 = vunpack.c.l.b16 %v337
      %v418 = vunpack.c.l.b16 %v338
      %v419 = vunpack.c.l.b16 %v339
      %v420 = vunpack.c.l.b16 %v340
      %v421 = vunpack.c.l.b16 %v341
      %v422 = vunpack.c.l.b16 %v342
      %v423 = vunpack.c.l.b16 %v343
      %v424 = vunpack.c.l.b16 %v344
      %v425 = vunpack.c.l.b16 %v345
      %v426 = vunpack.c.l.b16 %v346
      %v427 = vunpack.c.l.b16 %v347
      %v428 = vunpack.c.l.b16 %v348
      %v429 = vunpack.c.l.b16 %v349
      %v430 = vunpack.c.l.b16 %v350
      %v431 = vunpack.c.l.b16 %v351
      %v432 = vpack.c.b16 %v417, %v416
      %v433 = vpack.c.b16 %v419, %v418
      %v434 = vpack.c.b16 %v421, %v420
      %v435 = vpack.c.b16 %v423, %v422
      %v436 = vpack.c.b16 %v425, %v424
      %v437 = vpack.c.b16 %v427, %v426
      %v438 = vpack.c.b16 %v429, %v428
      %v439 = vpack.c.b16 %v431, %v430
      %448 = vmatprep.subr.bf16.mxu0 0
      %449 = vmatpush1.bf16.msra.mxu0 %v432
      %450 = vmatprep.subr.bf16.mxu0 0
      %451 = vmatpush1.bf16.msra.mxu0 %v433
      %452 = vmatprep.subr.bf16.mxu0 0
      %453 = vmatpush1.bf16.msra.mxu0 %v434
      %454 = vmatprep.subr.bf16.mxu0 0
      %455 = vmatpush1.bf16.msra.mxu0 %v435
      %456 = vmatprep.subr.bf16.mxu0 0
      %457 = vmatpush1.bf16.msra.mxu0 %v436
      %458 = vmatprep.subr.bf16.mxu0 0
      %459 = vmatpush1.bf16.msra.mxu0 %v437
      %460 = vmatprep.subr.bf16.mxu0 0
      %461 = vmatpush1.bf16.msra.mxu0 %v438
      %462 = vmatprep.subr.bf16.mxu0 0
      %463 = vmatpush1.bf16.msra.mxu0 %v439
      %464 = vmatprep.subr.bf16.mxu0 0
      %465 = vmatpush1.bf16.msra.mxu0 0
      %466 = vmatprep.subr.bf16.mxu0 0
      %467 = vmatpush1.bf16.msra.mxu0 0
      %468 = vmatprep.subr.bf16.mxu0 0
      %469 = vmatpush1.bf16.msra.mxu0 0
      %470 = vmatprep.subr.bf16.mxu0 0
      %471 = vmatpush1.bf16.msra.mxu0 0
      %472 = vmatprep.subr.bf16.mxu0 0
      %473 = vmatpush1.bf16.msra.mxu0 0
      %474 = vmatprep.subr.bf16.mxu0 0
      %475 = vmatpush1.bf16.msra.mxu0 0
      %476 = vmatprep.subr.bf16.mxu0 0
      %477 = vmatpush1.bf16.msra.mxu0 0
      %478 = vmatprep.subr.bf16.mxu0 0
      %479 = vmatpush1.bf16.msra.mxu0 0
      %480 = vmatprep.mubr.bf16.mxu0 0
      %481 = vmatmul.mubr.bf16.gmra.mrb[0].mxu0 %v384
      %v482 = vpop.f32.mrb[0].mxu0
      %v483 = vadd.f32 0.0, %v482
      %v484 = vpop.f32.mrb[0].mxu0
      %v485 = vpop.f32.mrb[0].mxu0
      %v486 = vadd.f32 0.0, %v485
      %v487 = vpop.f32.mrb[0].mxu0
      %488 = vmatprep.mubr.bf16.mxu0 0
      %489 = vmatmul.mubr.bf16.gmra.mrb[0].mxu0 %v385
      %v490 = vpop.f32.mrb[0].mxu0
      %v491 = vadd.f32 0.0, %v490
      %v492 = vpop.f32.mrb[0].mxu0
      %v493 = vpop.f32.mrb[0].mxu0
      %v494 = vadd.f32 0.0, %v493
      %v495 = vpop.f32.mrb[0].mxu0
      %496 = vmatprep.mubr.bf16.mxu0 0
      %497 = vmatmul.mubr.bf16.gmra.mrb[0].mxu0 %v386
      %v498 = vpop.f32.mrb[0].mxu0
      %v499 = vadd.f32 0.0, %v498
      %v500 = vpop.f32.mrb[0].mxu0
      %v501 = vpop.f32.mrb[0].mxu0
      %v502 = vadd.f32 0.0, %v501
      %v503 = vpop.f32.mrb[0].mxu0
      %504 = vmatprep.mubr.bf16.mxu0 0
      %505 = vmatmul.mubr.bf16.gmra.mrb[0].mxu0 %v387
      %v506 = vpop.f32.mrb[0].mxu0
      %v507 = vadd.f32 0.0, %v506
      %v508 = vpop.f32.mrb[0].mxu0
      %v509 = vpop.f32.mrb[0].mxu0
      %v510 = vadd.f32 0.0, %v509
      %v511 = vpop.f32.mrb[0].mxu0
      %512 = vmatprep.mubr.bf16.mxu0 0
      %513 = vmatmul.mubr.bf16.gmra.mrb[0].mxu0 %v388
      %v514 = vpop.f32.mrb[0].mxu0
      %v515 = vadd.f32 0.0, %v514
      %v516 = vpop.f32.mrb[0].mxu0
      %v517 = vpop.f32.mrb[0].mxu0
      %v518 = vadd.f32 0.0, %v517
      %v519 = vpop.f32.mrb[0].mxu0
      %520 = vmatprep.mubr.bf16.mxu0 0
      %521 = vmatmul.mubr.bf16.gmra.mrb[0].mxu0 %v389
      %v522 = vpop.f32.mrb[0].mxu0
      %v523 = vadd.f32 0.0, %v522
      %v524 = vpop.f32.mrb[0].mxu0
      %v525 = vpop.f32.mrb[0].mxu0
      %v526 = vadd.f32 0.0, %v525
      %v527 = vpop.f32.mrb[0].mxu0
      %528 = vmatprep.mubr.bf16.mxu0 0
      %529 = vmatmul.mubr.bf16.gmra.mrb[0].mxu0 %v390
      %v530 = vpop.f32.mrb[0].mxu0
      %v531 = vadd.f32 0.0, %v530
      %v532 = vpop.f32.mrb[0].mxu0
      %v533 = vpop.f32.mrb[0].mxu0
      %v534 = vadd.f32 0.0, %v533
      %v535 = vpop.f32.mrb[0].mxu0
      %536 = vmatprep.mubr.bf16.mxu0 0
      %537 = vmatmul.mubr.bf16.gmra.mrb[0].mxu0 %v391
      %v538 = vpop.f32.mrb[0].mxu0
      %v539 = vadd.f32 0.0, %v538
      %v540 = vpop.f32.mrb[0].mxu0
      %v541 = vpop.f32.mrb[0].mxu0
      %v542 = vadd.f32 0.0, %v541
      %v543 = vpop.f32.mrb[0].mxu0
      %544 = vdwg.mxu0
      %v545 = vpack.c.bf16 %v486, %v483
      %v546 = vpack.c.bf16 %v494, %v491
      %v547 = vpack.c.bf16 %v502, %v499
      %v548 = vpack.c.bf16 %v510, %v507
      %v549 = vpack.c.bf16 %v518, %v515
      %v550 = vpack.c.bf16 %v526, %v523
      %v551 = vpack.c.bf16 %v534, %v531
      %v552 = vpack.c.bf16 %v542, %v539
      %v553 = vld [vmem:[%s0] sm:$0x1]
      %v555 = vlaneseq
      %v556 = vshrl.u32 %v555, 7
      %v557 = vsub.s32 0, %v556
      %v558 = vrot.slane %v553, %v557
      %v560 = vld [vmem:[%s1] sm:$0x1]
      %v562 = vlaneseq
      %v563 = vshrl.u32 %v562, 7
      %v564 = vsub.s32 0, %v563
      %v565 = vrot.slane %v560, %v564
      %vm567 = vcmask 523264
      %568 = vst.msk [vmem:[#allocation2] sm:$0xff] %vm567, 0
      %569 = vst.msk [vmem:[#allocation2 + $0x48] sm:$0xff] %vm567, 0
      %v570 = vld [vmem:[%s313] sm:$0xf]
      %v571 = vld [vmem:[%s313 + $0x4] sm:$0xf]
      %v572 = vld [vmem:[%s313 + $0x8] sm:$0xf]
      %v573 = vld [vmem:[%s313 + $0xc] sm:$0xf]
      %v574 = vld [vmem:[%s313 + $0x10] sm:$0xf]
      %v575 = vld [vmem:[%s313 + $0x14] sm:$0xf]
      %v576 = vld [vmem:[%s313 + $0x18] sm:$0xf]
      %v577 = vld [vmem:[%s313 + $0x1c] sm:$0xf]
      %v586 = vunpack.c.l.b16 %v570
      %v587 = vunpack.c.l.b16 %v571
      %v588 = vunpack.c.l.b16 %v572
      %v589 = vunpack.c.l.b16 %v573
      %v590 = vunpack.c.l.b16 %v574
      %v591 = vunpack.c.l.b16 %v575
      %v592 = vunpack.c.l.b16 %v576
      %v593 = vunpack.c.l.b16 %v577
      %v594 = vpack.c.b16 %v587, %v586
      %v595 = vpack.c.b16 %v589, %v588
      %v596 = vpack.c.b16 %v591, %v590
      %v597 = vpack.c.b16 %v593, %v592
      %v603 = vsel %vm567, %v545, 0
      %605 = vmatprep.subr.bf16.mxu0 0
      %606 = vmatpush1.bf16.msra.mxu0 %v594
      %607 = vmatprep.subr.bf16.mxu0 0
      %608 = vmatpush1.bf16.msra.mxu0 %v595
      %609 = vmatprep.subr.bf16.mxu0 0
      %610 = vmatpush1.bf16.msra.mxu0 %v596
      %611 = vmatprep.subr.bf16.mxu0 0
      %612 = vmatpush1.bf16.msra.mxu0 %v597
      %613 = vmatprep.subr.bf16.mxu0 0
      %614 = vmatpush1.bf16.msra.mxu0 0
      %615 = vmatprep.subr.bf16.mxu0 0
      %616 = vmatpush1.bf16.msra.mxu0 0
      %617 = vmatprep.subr.bf16.mxu0 0
      %618 = vmatpush1.bf16.msra.mxu0 0
      %619 = vmatprep.subr.bf16.mxu0 0
      %620 = vmatpush1.bf16.msra.mxu0 0
      %621 = vmatprep.subr.bf16.mxu0 0
      %622 = vmatpush1.bf16.msra.mxu0 0
      %623 = vmatprep.subr.bf16.mxu0 0
      %624 = vmatpush1.bf16.msra.mxu0 0
      %625 = vmatprep.subr.bf16.mxu0 0
      %626 = vmatpush1.bf16.msra.mxu0 0
      %627 = vmatprep.subr.bf16.mxu0 0
      %628 = vmatpush1.bf16.msra.mxu0 0
      %629 = vmatprep.subr.bf16.mxu0 0
      %630 = vmatpush1.bf16.msra.mxu0 0
      %631 = vmatprep.subr.bf16.mxu0 0
      %632 = vmatpush1.bf16.msra.mxu0 0
      %633 = vmatprep.subr.bf16.mxu0 0
      %634 = vmatpush1.bf16.msra.mxu0 0
      %635 = vmatprep.subr.bf16.mxu0 0
      %636 = vmatpush1.bf16.msra.mxu0 0
      %637 = vmatprep.mubr.bf16.mxu0 0
      %638 = vmatmul.mubr.bf16.gmra.mrb[0].mxu0 %v603
      %v639 = vpop.f32.mrb[0].mxu0
      %v640 = vadd.f32 0.0, %v639
      %v641 = vpop.f32.mrb[0].mxu0
      %v642 = vpop.f32.mrb[0].mxu0
      %v643 = vadd.f32 0.0, %v642
      %v644 = vpop.f32.mrb[0].mxu0
      %645 = vdwg.mxu0
      %v646 = vmul.f32 %v640, %v558
      %v647 = vmul.f32 %v643, %v558
      %v648 = vadd.f32 %v646, %v565
      %v649 = vadd.f32 %v647, %v565
      %v650 = vmax.f32 %v648, 0.0
      %v651 = vmax.f32 %v649, 0.0
      %v652 = vpack.c.bf16 %v651, %v650
      %653 = vst.msk [vmem:[#allocation2 + $0x8] sm:$0xff] %vm567, %v652
      %s654 = scalar_lea.vmem %s313, 32
      %v655 = vld [vmem:[%s654] sm:$0xf]
      %v656 = vld [vmem:[%s654 + $0x4] sm:$0xf]
      %v657 = vld [vmem:[%s654 + $0x8] sm:$0xf]
      %v658 = vld [vmem:[%s654 + $0xc] sm:$0xf]
      %v659 = vld [vmem:[%s654 + $0x10] sm:$0xf]
      %v660 = vld [vmem:[%s654 + $0x14] sm:$0xf]
      %v661 = vld [vmem:[%s654 + $0x18] sm:$0xf]
      %v662 = vld [vmem:[%s654 + $0x1c] sm:$0xf]
      %v671 = vunpack.c.l.b16 %v655
      %v672 = vunpack.c.l.b16 %v656
      %v673 = vunpack.c.l.b16 %v657
      %v674 = vunpack.c.l.b16 %v658
      %v675 = vunpack.c.l.b16 %v659
      %v676 = vunpack.c.l.b16 %v660
      %v677 = vunpack.c.l.b16 %v661
      %v678 = vunpack.c.l.b16 %v662
      %v679 = vpack.c.b16 %v672, %v671
      %v680 = vpack.c.b16 %v674, %v673
      %v681 = vpack.c.b16 %v676, %v675
      %v682 = vpack.c.b16 %v678, %v677
      %v688 = vsel %vm567, %v546, 0
      %690 = vmatprep.subr.bf16.mxu0 0
      %691 = vmatpush1.bf16.msra.mxu0 %v679
      %692 = vmatprep.subr.bf16.mxu0 0
      %693 = vmatpush1.bf16.msra.mxu0 %v680
      %694 = vmatprep.subr.bf16.mxu0 0
      %695 = vmatpush1.bf16.msra.mxu0 %v681
      %696 = vmatprep.subr.bf16.mxu0 0
      %697 = vmatpush1.bf16.msra.mxu0 %v682
      %698 = vmatprep.subr.bf16.mxu0 0
      %699 = vmatpush1.bf16.msra.mxu0 0
      %700 = vmatprep.subr.bf16.mxu0 0
      %701 = vmatpush1.bf16.msra.mxu0 0
      %702 = vmatprep.subr.bf16.mxu0 0
      %703 = vmatpush1.bf16.msra.mxu0 0
      %704 = vmatprep.subr.bf16.mxu0 0
      %705 = vmatpush1.bf16.msra.mxu0 0
      %706 = vmatprep.subr.bf16.mxu0 0
      %707 = vmatpush1.bf16.msra.mxu0 0
      %708 = vmatprep.subr.bf16.mxu0 0
      %709 = vmatpush1.bf16.msra.mxu0 0
      %710 = vmatprep.subr.bf16.mxu0 0
      %711 = vmatpush1.bf16.msra.mxu0 0
      %712 = vmatprep.subr.bf16.mxu0 0
      %713 = vmatpush1.bf16.msra.mxu0 0
      %714 = vmatprep.subr.bf16.mxu0 0
      %715 = vmatpush1.bf16.msra.mxu0 0
      %716 = vmatprep.subr.bf16.mxu0 0
      %717 = vmatpush1.bf16.msra.mxu0 0
      %718 = vmatprep.subr.bf16.mxu0 0
      %719 = vmatpush1.bf16.msra.mxu0 0
      %720 = vmatprep.subr.bf16.mxu0 0
      %721 = vmatpush1.bf16.msra.mxu0 0
      %722 = vmatprep.mubr.bf16.mxu0 0
      %723 = vmatmul.mubr.bf16.gmra.mrb[0].mxu0 %v688
      %v724 = vpop.f32.mrb[0].mxu0
      %v725 = vadd.f32 0.0, %v724
      %v726 = vpop.f32.mrb[0].mxu0
      %v727 = vpop.f32.mrb[0].mxu0
      %v728 = vadd.f32 0.0, %v727
      %v729 = vpop.f32.mrb[0].mxu0
      %730 = vdwg.mxu0
      %v731 = vmul.f32 %v725, %v558
      %v732 = vmul.f32 %v728, %v558
      %v733 = vadd.f32 %v731, %v565
      %v734 = vadd.f32 %v732, %v565
      %v735 = vmax.f32 %v733, 0.0
      %v736 = vmax.f32 %v734, 0.0
      %v737 = vpack.c.bf16 %v736, %v735
      %738 = vst.msk [vmem:[#allocation2 + $0x10] sm:$0xff] %vm567, %v737
      %s739 = scalar_lea.vmem %s313, 64
      %v740 = vld [vmem:[%s739] sm:$0xf]
      %v741 = vld [vmem:[%s739 + $0x4] sm:$0xf]
      %v742 = vld [vmem:[%s739 + $0x8] sm:$0xf]
      %v743 = vld [vmem:[%s739 + $0xc] sm:$0xf]
      %v744 = vld [vmem:[%s739 + $0x10] sm:$0xf]
      %v745 = vld [vmem:[%s739 + $0x14] sm:$0xf]
      %v746 = vld [vmem:[%s739 + $0x18] sm:$0xf]
      %v747 = vld [vmem:[%s739 + $0x1c] sm:$0xf]
      %v756 = vunpack.c.l.b16 %v740
      %v757 = vunpack.c.l.b16 %v741
      %v758 = vunpack.c.l.b16 %v742
      %v759 = vunpack.c.l.b16 %v743
      %v760 = vunpack.c.l.b16 %v744
      %v761 = vunpack.c.l.b16 %v745
      %v762 = vunpack.c.l.b16 %v746
      %v763 = vunpack.c.l.b16 %v747
      %v764 = vpack.c.b16 %v757, %v756
      %v765 = vpack.c.b16 %v759, %v758
      %v766 = vpack.c.b16 %v761, %v760
      %v767 = vpack.c.b16 %v763, %v762
      %v773 = vsel %vm567, %v547, 0
      %775 = vmatprep.subr.bf16.mxu0 0
      %776 = vmatpush1.bf16.msra.mxu0 %v764
      %777 = vmatprep.subr.bf16.mxu0 0
      %778 = vmatpush1.bf16.msra.mxu0 %v765
      %779 = vmatprep.subr.bf16.mxu0 0
      %780 = vmatpush1.bf16.msra.mxu0 %v766
      %781 = vmatprep.subr.bf16.mxu0 0
      %782 = vmatpush1.bf16.msra.mxu0 %v767
      %783 = vmatprep.subr.bf16.mxu0 0
      %784 = vmatpush1.bf16.msra.mxu0 0
      %785 = vmatprep.subr.bf16.mxu0 0
      %786 = vmatpush1.bf16.msra.mxu0 0
      %787 = vmatprep.subr.bf16.mxu0 0
      %788 = vmatpush1.bf16.msra.mxu0 0
      %789 = vmatprep.subr.bf16.mxu0 0
      %790 = vmatpush1.bf16.msra.mxu0 0
      %791 = vmatprep.subr.bf16.mxu0 0
      %792 = vmatpush1.bf16.msra.mxu0 0
      %793 = vmatprep.subr.bf16.mxu0 0
      %794 = vmatpush1.bf16.msra.mxu0 0
      %795 = vmatprep.subr.bf16.mxu0 0
      %796 = vmatpush1.bf16.msra.mxu0 0
      %797 = vmatprep.subr.bf16.mxu0 0
      %798 = vmatpush1.bf16.msra.mxu0 0
      %799 = vmatprep.subr.bf16.mxu0 0
      %800 = vmatpush1.bf16.msra.mxu0 0
      %801 = vmatprep.subr.bf16.mxu0 0
      %802 = vmatpush1.bf16.msra.mxu0 0
      %803 = vmatprep.subr.bf16.mxu0 0
      %804 = vmatpush1.bf16.msra.mxu0 0
      %805 = vmatprep.subr.bf16.mxu0 0
      %806 = vmatpush1.bf16.msra.mxu0 0
      %807 = vmatprep.mubr.bf16.mxu0 0
      %808 = vmatmul.mubr.bf16.gmra.mrb[0].mxu0 %v773
      %v809 = vpop.f32.mrb[0].mxu0
      %v810 = vadd.f32 0.0, %v809
      %v811 = vpop.f32.mrb[0].mxu0
      %v812 = vpop.f32.mrb[0].mxu0
      %v813 = vadd.f32 0.0, %v812
      %v814 = vpop.f32.mrb[0].mxu0
      %815 = vdwg.mxu0
      %v816 = vmul.f32 %v810, %v558
      %v817 = vmul.f32 %v813, %v558
      %v818 = vadd.f32 %v816, %v565
      %v819 = vadd.f32 %v817, %v565
      %v820 = vmax.f32 %v818, 0.0
      %v821 = vmax.f32 %v819, 0.0
      %v822 = vpack.c.bf16 %v821, %v820
      %823 = vst.msk [vmem:[#allocation2 + $0x18] sm:$0xff] %vm567, %v822
      %s824 = scalar_lea.vmem %s313, 96
      %v825 = vld [vmem:[%s824] sm:$0xf]
      %v826 = vld [vmem:[%s824 + $0x4] sm:$0xf]
      %v827 = vld [vmem:[%s824 + $0x8] sm:$0xf]
      %v828 = vld [vmem:[%s824 + $0xc] sm:$0xf]
      %v829 = vld [vmem:[%s824 + $0x10] sm:$0xf]
      %v830 = vld [vmem:[%s824 + $0x14] sm:$0xf]
      %v831 = vld [vmem:[%s824 + $0x18] sm:$0xf]
      %v832 = vld [vmem:[%s824 + $0x1c] sm:$0xf]
      %v841 = vunpack.c.l.b16 %v825
      %v842 = vunpack.c.l.b16 %v826
      %v843 = vunpack.c.l.b16 %v827
      %v844 = vunpack.c.l.b16 %v828
      %v845 = vunpack.c.l.b16 %v829
      %v846 = vunpack.c.l.b16 %v830
      %v847 = vunpack.c.l.b16 %v831
      %v848 = vunpack.c.l.b16 %v832
      %v849 = vpack.c.b16 %v842, %v841
      %v850 = vpack.c.b16 %v844, %v843
      %v851 = vpack.c.b16 %v846, %v845
      %v852 = vpack.c.b16 %v848, %v847
      %v858 = vsel %vm567, %v548, 0
      %860 = vmatprep.subr.bf16.mxu0 0
      %861 = vmatpush1.bf16.msra.mxu0 %v849
      %862 = vmatprep.subr.bf16.mxu0 0
      %863 = vmatpush1.bf16.msra.mxu0 %v850
      %864 = vmatprep.subr.bf16.mxu0 0
      %865 = vmatpush1.bf16.msra.mxu0 %v851
      %866 = vmatprep.subr.bf16.mxu0 0
      %867 = vmatpush1.bf16.msra.mxu0 %v852
      %868 = vmatprep.subr.bf16.mxu0 0
      %869 = vmatpush1.bf16.msra.mxu0 0
      %870 = vmatprep.subr.bf16.mxu0 0
      %871 = vmatpush1.bf16.msra.mxu0 0
      %872 = vmatprep.subr.bf16.mxu0 0
      %873 = vmatpush1.bf16.msra.mxu0 0
      %874 = vmatprep.subr.bf16.mxu0 0
      %875 = vmatpush1.bf16.msra.mxu0 0
      %876 = vmatprep.subr.bf16.mxu0 0
      %877 = vmatpush1.bf16.msra.mxu0 0
      %878 = vmatprep.subr.bf16.mxu0 0
      %879 = vmatpush1.bf16.msra.mxu0 0
      %880 = vmatprep.subr.bf16.mxu0 0
      %881 = vmatpush1.bf16.msra.mxu0 0
      %882 = vmatprep.subr.bf16.mxu0 0
      %883 = vmatpush1.bf16.msra.mxu0 0
      %884 = vmatprep.subr.bf16.mxu0 0
      %885 = vmatpush1.bf16.msra.mxu0 0
      %886 = vmatprep.subr.bf16.mxu0 0
      %887 = vmatpush1.bf16.msra.mxu0 0
      %888 = vmatprep.subr.bf16.mxu0 0
      %889 = vmatpush1.bf16.msra.mxu0 0
      %890 = vmatprep.subr.bf16.mxu0 0
      %891 = vmatpush1.bf16.msra.mxu0 0
      %892 = vmatprep.mubr.bf16.mxu0 0
      %893 = vmatmul.mubr.bf16.gmra.mrb[0].mxu0 %v858
      %v894 = vpop.f32.mrb[0].mxu0
      %v895 = vadd.f32 0.0, %v894
      %v896 = vpop.f32.mrb[0].mxu0
      %v897 = vpop.f32.mrb[0].mxu0
      %v898 = vadd.f32 0.0, %v897
      %v899 = vpop.f32.mrb[0].mxu0
      %900 = vdwg.mxu0
      %v901 = vmul.f32 %v895, %v558
      %v902 = vmul.f32 %v898, %v558
      %v903 = vadd.f32 %v901, %v565
      %v904 = vadd.f32 %v902, %v565
      %v905 = vmax.f32 %v903, 0.0
      %v906 = vmax.f32 %v904, 0.0
      %v907 = vpack.c.bf16 %v906, %v905
      %908 = vst.msk [vmem:[#allocation2 + $0x20] sm:$0xff] %vm567, %v907
      %s909 = scalar_lea.vmem %s313, 128
      %v910 = vld [vmem:[%s909] sm:$0xf]
      %v911 = vld [vmem:[%s909 + $0x4] sm:$0xf]
      %v912 = vld [vmem:[%s909 + $0x8] sm:$0xf]
      %v913 = vld [vmem:[%s909 + $0xc] sm:$0xf]
      %v914 = vld [vmem:[%s909 + $0x10] sm:$0xf]
      %v915 = vld [vmem:[%s909 + $0x14] sm:$0xf]
      %v916 = vld [vmem:[%s909 + $0x18] sm:$0xf]
      %v917 = vld [vmem:[%s909 + $0x1c] sm:$0xf]
      %v926 = vunpack.c.l.b16 %v910
      %v927 = vunpack.c.l.b16 %v911
      %v928 = vunpack.c.l.b16 %v912
      %v929 = vunpack.c.l.b16 %v913
      %v930 = vunpack.c.l.b16 %v914
      %v931 = vunpack.c.l.b16 %v915
      %v932 = vunpack.c.l.b16 %v916
      %v933 = vunpack.c.l.b16 %v917
      %v934 = vpack.c.b16 %v927, %v926
      %v935 = vpack.c.b16 %v929, %v928
      %v936 = vpack.c.b16 %v931, %v930
      %v937 = vpack.c.b16 %v933, %v932
      %v943 = vsel %vm567, %v549, 0
      %945 = vmatprep.subr.bf16.mxu0 0
      %946 = vmatpush1.bf16.msra.mxu0 %v934
      %947 = vmatprep.subr.bf16.mxu0 0
      %948 = vmatpush1.bf16.msra.mxu0 %v935
      %949 = vmatprep.subr.bf16.mxu0 0
      %950 = vmatpush1.bf16.msra.mxu0 %v936
      %951 = vmatprep.subr.bf16.mxu0 0
      %952 = vmatpush1.bf16.msra.mxu0 %v937
      %953 = vmatprep.subr.bf16.mxu0 0
      %954 = vmatpush1.bf16.msra.mxu0 0
      %955 = vmatprep.subr.bf16.mxu0 0
      %956 = vmatpush1.bf16.msra.mxu0 0
      %957 = vmatprep.subr.bf16.mxu0 0
      %958 = vmatpush1.bf16.msra.mxu0 0
      %959 = vmatprep.subr.bf16.mxu0 0
      %960 = vmatpush1.bf16.msra.mxu0 0
      %961 = vmatprep.subr.bf16.mxu0 0
      %962 = vmatpush1.bf16.msra.mxu0 0
      %963 = vmatprep.subr.bf16.mxu0 0
      %964 = vmatpush1.bf16.msra.mxu0 0
      %965 = vmatprep.subr.bf16.mxu0 0
      %966 = vmatpush1.bf16.msra.mxu0 0
      %967 = vmatprep.subr.bf16.mxu0 0
      %968 = vmatpush1.bf16.msra.mxu0 0
      %969 = vmatprep.subr.bf16.mxu0 0
      %970 = vmatpush1.bf16.msra.mxu0 0
      %971 = vmatprep.subr.bf16.mxu0 0
      %972 = vmatpush1.bf16.msra.mxu0 0
      %973 = vmatprep.subr.bf16.mxu0 0
      %974 = vmatpush1.bf16.msra.mxu0 0
      %975 = vmatprep.subr.bf16.mxu0 0
      %976 = vmatpush1.bf16.msra.mxu0 0
      %977 = vmatprep.mubr.bf16.mxu0 0
      %978 = vmatmul.mubr.bf16.gmra.mrb[0].mxu0 %v943
      %v979 = vpop.f32.mrb[0].mxu0
      %v980 = vadd.f32 0.0, %v979
      %v981 = vpop.f32.mrb[0].mxu0
      %v982 = vpop.f32.mrb[0].mxu0
      %v983 = vadd.f32 0.0, %v982
      %v984 = vpop.f32.mrb[0].mxu0
      %985 = vdwg.mxu0
      %v986 = vmul.f32 %v980, %v558
      %v987 = vmul.f32 %v983, %v558
      %v988 = vadd.f32 %v986, %v565
      %v989 = vadd.f32 %v987, %v565
      %v990 = vmax.f32 %v988, 0.0
      %v991 = vmax.f32 %v989, 0.0
      %v992 = vpack.c.bf16 %v991, %v990
      %993 = vst.msk [vmem:[#allocation2 + $0x28] sm:$0xff] %vm567, %v992
      %s994 = scalar_lea.vmem %s313, 160
      %v995 = vld [vmem:[%s994] sm:$0xf]
      %v996 = vld [vmem:[%s994 + $0x4] sm:$0xf]
      %v997 = vld [vmem:[%s994 + $0x8] sm:$0xf]
      %v998 = vld [vmem:[%s994 + $0xc] sm:$0xf]
      %v999 = vld [vmem:[%s994 + $0x10] sm:$0xf]
      %v1000 = vld [vmem:[%s994 + $0x14] sm:$0xf]
      %v1001 = vld [vmem:[%s994 + $0x18] sm:$0xf]
      %v1002 = vld [vmem:[%s994 + $0x1c] sm:$0xf]
      %v1011 = vunpack.c.l.b16 %v995
      %v1012 = vunpack.c.l.b16 %v996
      %v1013 = vunpack.c.l.b16 %v997
      %v1014 = vunpack.c.l.b16 %v998
      %v1015 = vunpack.c.l.b16 %v999
      %v1016 = vunpack.c.l.b16 %v1000
      %v1017 = vunpack.c.l.b16 %v1001
      %v1018 = vunpack.c.l.b16 %v1002
      %v1019 = vpack.c.b16 %v1012, %v1011
      %v1020 = vpack.c.b16 %v1014, %v1013
      %v1021 = vpack.c.b16 %v1016, %v1015
      %v1022 = vpack.c.b16 %v1018, %v1017
      %v1028 = vsel %vm567, %v550, 0
      %1030 = vmatprep.subr.bf16.mxu0 0
      %1031 = vmatpush1.bf16.msra.mxu0 %v1019
      %1032 = vmatprep.subr.bf16.mxu0 0
      %1033 = vmatpush1.bf16.msra.mxu0 %v1020
      %1034 = vmatprep.subr.bf16.mxu0 0
      %1035 = vmatpush1.bf16.msra.mxu0 %v1021
      %1036 = vmatprep.subr.bf16.mxu0 0
      %1037 = vmatpush1.bf16.msra.mxu0 %v1022
      %1038 = vmatprep.subr.bf16.mxu0 0
      %1039 = vmatpush1.bf16.msra.mxu0 0
      %1040 = vmatprep.subr.bf16.mxu0 0
      %1041 = vmatpush1.bf16.msra.mxu0 0
      %1042 = vmatprep.subr.bf16.mxu0 0
      %1043 = vmatpush1.bf16.msra.mxu0 0
      %1044 = vmatprep.subr.bf16.mxu0 0
      %1045 = vmatpush1.bf16.msra.mxu0 0
      %1046 = vmatprep.subr.bf16.mxu0 0
      %1047 = vmatpush1.bf16.msra.mxu0 0
      %1048 = vmatprep.subr.bf16.mxu0 0
      %1049 = vmatpush1.bf16.msra.mxu0 0
      %1050 = vmatprep.subr.bf16.mxu0 0
      %1051 = vmatpush1.bf16.msra.mxu0 0
      %1052 = vmatprep.subr.bf16.mxu0 0
      %1053 = vmatpush1.bf16.msra.mxu0 0
      %1054 = vmatprep.subr.bf16.mxu0 0
      %1055 = vmatpush1.bf16.msra.mxu0 0
      %1056 = vmatprep.subr.bf16.mxu0 0
      %1057 = vmatpush1.bf16.msra.mxu0 0
      %1058 = vmatprep.subr.bf16.mxu0 0
      %1059 = vmatpush1.bf16.msra.mxu0 0
      %1060 = vmatprep.subr.bf16.mxu0 0
      %1061 = vmatpush1.bf16.msra.mxu0 0
      %1062 = vmatprep.mubr.bf16.mxu0 0
      %1063 = vmatmul.mubr.bf16.gmra.mrb[0].mxu0 %v1028
      %v1064 = vpop.f32.mrb[0].mxu0
      %v1065 = vadd.f32 0.0, %v1064
      %v1066 = vpop.f32.mrb[0].mxu0
      %v1067 = vpop.f32.mrb[0].mxu0
      %v1068 = vadd.f32 0.0, %v1067
      %v1069 = vpop.f32.mrb[0].mxu0
      %1070 = vdwg.mxu0
      %v1071 = vmul.f32 %v1065, %v558
      %v1072 = vmul.f32 %v1068, %v558
      %v1073 = vadd.f32 %v1071, %v565
      %v1074 = vadd.f32 %v1072, %v565
      %v1075 = vmax.f32 %v1073, 0.0
      %v1076 = vmax.f32 %v1074, 0.0
      %v1077 = vpack.c.bf16 %v1076, %v1075
      %1078 = vst.msk [vmem:[#allocation2 + $0x30] sm:$0xff] %vm567, %v1077
      %s1079 = scalar_lea.vmem %s313, 192
      %v1080 = vld [vmem:[%s1079] sm:$0xf]
      %v1081 = vld [vmem:[%s1079 + $0x4] sm:$0xf]
      %v1082 = vld [vmem:[%s1079 + $0x8] sm:$0xf]
      %v1083 = vld [vmem:[%s1079 + $0xc] sm:$0xf]
      %v1084 = vld [vmem:[%s1079 + $0x10] sm:$0xf]
      %v1085 = vld [vmem:[%s1079 + $0x14] sm:$0xf]
      %v1086 = vld [vmem:[%s1079 + $0x18] sm:$0xf]
      %v1087 = vld [vmem:[%s1079 + $0x1c] sm:$0xf]
      %v1096 = vunpack.c.l.b16 %v1080
      %v1097 = vunpack.c.l.b16 %v1081
      %v1098 = vunpack.c.l.b16 %v1082
      %v1099 = vunpack.c.l.b16 %v1083
      %v1100 = vunpack.c.l.b16 %v1084
      %v1101 = vunpack.c.l.b16 %v1085
      %v1102 = vunpack.c.l.b16 %v1086
      %v1103 = vunpack.c.l.b16 %v1087
      %v1104 = vpack.c.b16 %v1097, %v1096
      %v1105 = vpack.c.b16 %v1099, %v1098
      %v1106 = vpack.c.b16 %v1101, %v1100
      %v1107 = vpack.c.b16 %v1103, %v1102
      %v1113 = vsel %vm567, %v551, 0
      %1115 = vmatprep.subr.bf16.mxu0 0
      %1116 = vmatpush1.bf16.msra.mxu0 %v1104
      %1117 = vmatprep.subr.bf16.mxu0 0
      %1118 = vmatpush1.bf16.msra.mxu0 %v1105
      %1119 = vmatprep.subr.bf16.mxu0 0
      %1120 = vmatpush1.bf16.msra.mxu0 %v1106
      %1121 = vmatprep.subr.bf16.mxu0 0
      %1122 = vmatpush1.bf16.msra.mxu0 %v1107
      %1123 = vmatprep.subr.bf16.mxu0 0
      %1124 = vmatpush1.bf16.msra.mxu0 0
      %1125 = vmatprep.subr.bf16.mxu0 0
      %1126 = vmatpush1.bf16.msra.mxu0 0
      %1127 = vmatprep.subr.bf16.mxu0 0
      %1128 = vmatpush1.bf16.msra.mxu0 0
      %1129 = vmatprep.subr.bf16.mxu0 0
      %1130 = vmatpush1.bf16.msra.mxu0 0
      %1131 = vmatprep.subr.bf16.mxu0 0
      %1132 = vmatpush1.bf16.msra.mxu0 0
      %1133 = vmatprep.subr.bf16.mxu0 0
      %1134 = vmatpush1.bf16.msra.mxu0 0
      %1135 = vmatprep.subr.bf16.mxu0 0
      %1136 = vmatpush1.bf16.msra.mxu0 0
      %1137 = vmatprep.subr.bf16.mxu0 0
      %1138 = vmatpush1.bf16.msra.mxu0 0
      %1139 = vmatprep.subr.bf16.mxu0 0
      %1140 = vmatpush1.bf16.msra.mxu0 0
      %1141 = vmatprep.subr.bf16.mxu0 0
      %1142 = vmatpush1.bf16.msra.mxu0 0
      %1143 = vmatprep.subr.bf16.mxu0 0
      %1144 = vmatpush1.bf16.msra.mxu0 0
      %1145 = vmatprep.subr.bf16.mxu0 0
      %1146 = vmatpush1.bf16.msra.mxu0 0
      %1147 = vmatprep.mubr.bf16.mxu0 0
      %1148 = vmatmul.mubr.bf16.gmra.mrb[0].mxu0 %v1113
      %v1149 = vpop.f32.mrb[0].mxu0
      %v1150 = vadd.f32 0.0, %v1149
      %v1151 = vpop.f32.mrb[0].mxu0
      %v1152 = vpop.f32.mrb[0].mxu0
      %v1153 = vadd.f32 0.0, %v1152
      %v1154 = vpop.f32.mrb[0].mxu0
      %1155 = vdwg.mxu0
      %v1156 = vmul.f32 %v1150, %v558
      %v1157 = vmul.f32 %v1153, %v558
      %v1158 = vadd.f32 %v1156, %v565
      %v1159 = vadd.f32 %v1157, %v565
      %v1160 = vmax.f32 %v1158, 0.0
      %v1161 = vmax.f32 %v1159, 0.0
      %v1162 = vpack.c.bf16 %v1161, %v1160
      %1163 = vst.msk [vmem:[#allocation2 + $0x38] sm:$0xff] %vm567, %v1162
      %s1164 = scalar_lea.vmem %s313, 224
      %v1165 = vld [vmem:[%s1164] sm:$0xf]
      %v1166 = vld [vmem:[%s1164 + $0x4] sm:$0xf]
      %v1167 = vld [vmem:[%s1164 + $0x8] sm:$0xf]
      %v1168 = vld [vmem:[%s1164 + $0xc] sm:$0xf]
      %v1169 = vld [vmem:[%s1164 + $0x10] sm:$0xf]
      %v1170 = vld [vmem:[%s1164 + $0x14] sm:$0xf]
      %v1171 = vld [vmem:[%s1164 + $0x18] sm:$0xf]
      %v1172 = vld [vmem:[%s1164 + $0x1c] sm:$0xf]
      %v1181 = vunpack.c.l.b16 %v1165
      %v1182 = vunpack.c.l.b16 %v1166
      %v1183 = vunpack.c.l.b16 %v1167
      %v1184 = vunpack.c.l.b16 %v1168
      %v1185 = vunpack.c.l.b16 %v1169
      %v1186 = vunpack.c.l.b16 %v1170
      %v1187 = vunpack.c.l.b16 %v1171
      %v1188 = vunpack.c.l.b16 %v1172
      %v1189 = vpack.c.b16 %v1182, %v1181
      %v1190 = vpack.c.b16 %v1184, %v1183
      %v1191 = vpack.c.b16 %v1186, %v1185
      %v1192 = vpack.c.b16 %v1188, %v1187
      %v1198 = vsel %vm567, %v552, 0
      %1200 = vmatprep.subr.bf16.mxu0 0
      %1201 = vmatpush1.bf16.msra.mxu0 %v1189
      %1202 = vmatprep.subr.bf16.mxu0 0
      %1203 = vmatpush1.bf16.msra.mxu0 %v1190
      %1204 = vmatprep.subr.bf16.mxu0 0
      %1205 = vmatpush1.bf16.msra.mxu0 %v1191
      %1206 = vmatprep.subr.bf16.mxu0 0
      %1207 = vmatpush1.bf16.msra.mxu0 %v1192
      %1208 = vmatprep.subr.bf16.mxu0 0
      %1209 = vmatpush1.bf16.msra.mxu0 0
      %1210 = vmatprep.subr.bf16.mxu0 0
      %1211 = vmatpush1.bf16.msra.mxu0 0
      %1212 = vmatprep.subr.bf16.mxu0 0
      %1213 = vmatpush1.bf16.msra.mxu0 0
      %1214 = vmatprep.subr.bf16.mxu0 0
      %1215 = vmatpush1.bf16.msra.mxu0 0
      %1216 = vmatprep.subr.bf16.mxu0 0
      %1217 = vmatpush1.bf16.msra.mxu0 0
      %1218 = vmatprep.subr.bf16.mxu0 0
      %1219 = vmatpush1.bf16.msra.mxu0 0
      %1220 = vmatprep.subr.bf16.mxu0 0
      %1221 = vmatpush1.bf16.msra.mxu0 0
      %1222 = vmatprep.subr.bf16.mxu0 0
      %1223 = vmatpush1.bf16.msra.mxu0 0
      %1224 = vmatprep.subr.bf16.mxu0 0
      %1225 = vmatpush1.bf16.msra.mxu0 0
      %1226 = vmatprep.subr.bf16.mxu0 0
      %1227 = vmatpush1.bf16.msra.mxu0 0
      %1228 = vmatprep.subr.bf16.mxu0 0
      %1229 = vmatpush1.bf16.msra.mxu0 0
      %1230 = vmatprep.subr.bf16.mxu0 0
      %1231 = vmatpush1.bf16.msra.mxu0 0
      %1232 = vmatprep.mubr.bf16.mxu0 0
      %1233 = vmatmul.mubr.bf16.gmra.mrb[0].mxu0 %v1198
      %v1234 = vpop.f32.mrb[0].mxu0
      %v1235 = vadd.f32 0.0, %v1234
      %v1236 = vpop.f32.mrb[0].mxu0
      %v1237 = vpop.f32.mrb[0].mxu0
      %v1238 = vadd.f32 0.0, %v1237
      %v1239 = vpop.f32.mrb[0].mxu0
      %1240 = vdwg.mxu0
      %v1241 = vmul.f32 %v1235, %v558
      %v1242 = vmul.f32 %v1238, %v558
      %v1243 = vadd.f32 %v1241, %v565
      %v1244 = vadd.f32 %v1242, %v565
      %v1245 = vmax.f32 %v1243, 0.0
      %v1246 = vmax.f32 %v1244, 0.0
      %v1247 = vpack.c.bf16 %v1246, %v1245
      %1248 = vst.msk [vmem:[#allocation2 + $0x40] sm:$0xff] %vm567, %v1247
      %v1249 = vld [vmem:[#allocation2] sm:$0xff]
      %v1250 = vld [vmem:[#allocation2 + $0x8] sm:$0xff]
      %v1251 = vld [vmem:[#allocation2 + $0x10] sm:$0xff]
      %v1252 = vld [vmem:[#allocation2 + $0x18] sm:$0xff]
      %v1253 = vld [vmem:[#allocation2 + $0x20] sm:$0xff]
      %v1254 = vld [vmem:[#allocation2 + $0x28] sm:$0xff]
      %v1255 = vld [vmem:[#allocation2 + $0x30] sm:$0xff]
      %v1256 = vld [vmem:[#allocation2 + $0x38] sm:$0xff]
      %v1257 = vld [vmem:[%s3] sm:$0xf]
      %v1258 = vld [vmem:[%s3 + $0x4] sm:$0xf]
      %v1259 = vld [vmem:[%s3 + $0x8] sm:$0xf]
      %v1260 = vld [vmem:[%s3 + $0xc] sm:$0xf]
      %v1261 = vld [vmem:[%s3 + $0x10] sm:$0xf]
      %v1262 = vld [vmem:[%s3 + $0x14] sm:$0xf]
      %v1263 = vld [vmem:[%s3 + $0x18] sm:$0xf]
      %v1264 = vld [vmem:[%s3 + $0x1c] sm:$0xf]
      %v1265 = vld [vmem:[#allocation2 + $0x40] sm:$0xff]
      %s1266 = scalar_lea.vmem %s3, 32
      %v1267 = vld [vmem:[%s1266] sm:$0xf]
      %v1268 = vld [vmem:[%s1266 + $0x4] sm:$0xf]
      %v1269 = vld [vmem:[%s1266 + $0x8] sm:$0xf]
      %v1270 = vld [vmem:[%s1266 + $0xc] sm:$0xf]
      %v1271 = vld [vmem:[%s1266 + $0x10] sm:$0xf]
      %v1272 = vld [vmem:[%s1266 + $0x14] sm:$0xf]
      %v1273 = vld [vmem:[%s1266 + $0x18] sm:$0xf]
      %v1274 = vld [vmem:[%s1266 + $0x1c] sm:$0xf]
      %v1283 = vunpack.c.l.b16 %v1267
      %v1284 = vunpack.c.l.b16 %v1268
      %v1285 = vunpack.c.l.b16 %v1269
      %v1286 = vunpack.c.l.b16 %v1270
      %v1287 = vunpack.c.l.b16 %v1271
      %v1288 = vunpack.c.l.b16 %v1272
      %v1289 = vunpack.c.l.b16 %v1273
      %v1290 = vunpack.c.l.b16 %v1274
      %v1291 = vpack.c.b16 %v1284, %v1283
      %v1292 = vpack.c.b16 %v1286, %v1285
      %v1293 = vpack.c.b16 %v1288, %v1287
      %v1294 = vpack.c.b16 %v1290, %v1289
      %v1300 = vsel %vm567, %v1250, 0
      %v1303 = vsel %vm567, %v1251, 0
      %v1306 = vsel %vm567, %v1252, 0
      %v1309 = vsel %vm567, %v1253, 0
      %v1312 = vsel %vm567, %v1254, 0
      %v1315 = vsel %vm567, %v1255, 0
      %v1318 = vsel %vm567, %v1256, 0
      %v1321 = vsel %vm567, %v1265, 0
      %1323 = vmatprep.subr.bf16.mxu0 0
      %1324 = vmatpush1.bf16.msra.mxu0 %v1291
      %1325 = vmatprep.subr.bf16.mxu0 0
      %1326 = vmatpush1.bf16.msra.mxu0 %v1292
      %1327 = vmatprep.subr.bf16.mxu0 0
      %1328 = vmatpush1.bf16.msra.mxu0 %v1293
      %1329 = vmatprep.subr.bf16.mxu0 0
      %1330 = vmatpush1.bf16.msra.mxu0 %v1294
      %1331 = vmatprep.subr.bf16.mxu0 0
      %1332 = vmatpush1.bf16.msra.mxu0 0
      %1333 = vmatprep.subr.bf16.mxu0 0
      %1334 = vmatpush1.bf16.msra.mxu0 0
      %1335 = vmatprep.subr.bf16.mxu0 0
      %1336 = vmatpush1.bf16.msra.mxu0 0
      %1337 = vmatprep.subr.bf16.mxu0 0
      %1338 = vmatpush1.bf16.msra.mxu0 0
      %1339 = vmatprep.subr.bf16.mxu0 0
      %1340 = vmatpush1.bf16.msra.mxu0 0
      %1341 = vmatprep.subr.bf16.mxu0 0
      %1342 = vmatpush1.bf16.msra.mxu0 0
      %1343 = vmatprep.subr.bf16.mxu0 0
      %1344 = vmatpush1.bf16.msra.mxu0 0
      %1345 = vmatprep.subr.bf16.mxu0 0
      %1346 = vmatpush1.bf16.msra.mxu0 0
      %1347 = vmatprep.subr.bf16.mxu0 0
      %1348 = vmatpush1.bf16.msra.mxu0 0
      %1349 = vmatprep.subr.bf16.mxu0 0
      %1350 = vmatpush1.bf16.msra.mxu0 0
      %1351 = vmatprep.subr.bf16.mxu0 0
      %1352 = vmatpush1.bf16.msra.mxu0 0
      %1353 = vmatprep.subr.bf16.mxu0 0
      %1354 = vmatpush1.bf16.msra.mxu0 0
      %1355 = vmatprep.mubr.bf16.mxu0 0
      %1356 = vmatmul.mubr.bf16.gmra.mrb[0].mxu0 %v1300
      %v1357 = vpop.f32.mrb[0].mxu0
      %v1358 = vadd.f32 0.0, %v1357
      %v1359 = vpop.f32.mrb[0].mxu0
      %v1360 = vpop.f32.mrb[0].mxu0
      %v1361 = vadd.f32 0.0, %v1360
      %v1362 = vpop.f32.mrb[0].mxu0
      %1363 = vmatprep.mubr.bf16.mxu0 0
      %1364 = vmatmul.mubr.bf16.gmra.mrb[0].mxu0 %v1303
      %v1365 = vpop.f32.mrb[0].mxu0
      %v1366 = vadd.f32 0.0, %v1365
      %v1367 = vpop.f32.mrb[0].mxu0
      %v1368 = vpop.f32.mrb[0].mxu0
      %v1369 = vadd.f32 0.0, %v1368
      %v1370 = vpop.f32.mrb[0].mxu0
      %1371 = vmatprep.mubr.bf16.mxu0 0
      %1372 = vmatmul.mubr.bf16.gmra.mrb[0].mxu0 %v1306
      %v1373 = vpop.f32.mrb[0].mxu0
      %v1374 = vadd.f32 0.0, %v1373
      %v1375 = vpop.f32.mrb[0].mxu0
      %v1376 = vpop.f32.mrb[0].mxu0
      %v1377 = vadd.f32 0.0, %v1376
      %v1378 = vpop.f32.mrb[0].mxu0
      %1379 = vmatprep.mubr.bf16.mxu0 0
      %1380 = vmatmul.mubr.bf16.gmra.mrb[0].mxu0 %v1309
      %v1381 = vpop.f32.mrb[0].mxu0
      %v1382 = vadd.f32 0.0, %v1381
      %v1383 = vpop.f32.mrb[0].mxu0
      %v1384 = vpop.f32.mrb[0].mxu0
      %v1385 = vadd.f32 0.0, %v1384
      %v1386 = vpop.f32.mrb[0].mxu0
      %1387 = vmatprep.mubr.bf16.mxu0 0
      %1388 = vmatmul.mubr.bf16.gmra.mrb[0].mxu0 %v1312
      %v1389 = vpop.f32.mrb[0].mxu0
      %v1390 = vadd.f32 0.0, %v1389
      %v1391 = vpop.f32.mrb[0].mxu0
      %v1392 = vpop.f32.mrb[0].mxu0
      %v1393 = vadd.f32 0.0, %v1392
      %v1394 = vpop.f32.mrb[0].mxu0
      %1395 = vmatprep.mubr.bf16.mxu0 0
      %1396 = vmatmul.mubr.bf16.gmra.mrb[0].mxu0 %v1315
      %v1397 = vpop.f32.mrb[0].mxu0
      %v1398 = vadd.f32 0.0, %v1397
      %v1399 = vpop.f32.mrb[0].mxu0
      %v1400 = vpop.f32.mrb[0].mxu0
      %v1401 = vadd.f32 0.0, %v1400
      %v1402 = vpop.f32.mrb[0].mxu0
      %1403 = vmatprep.mubr.bf16.mxu0 0
      %1404 = vmatmul.mubr.bf16.gmra.mrb[0].mxu0 %v1318
      %v1405 = vpop.f32.mrb[0].mxu0
      %v1406 = vadd.f32 0.0, %v1405
      %v1407 = vpop.f32.mrb[0].mxu0
      %v1408 = vpop.f32.mrb[0].mxu0
      %v1409 = vadd.f32 0.0, %v1408
      %v1410 = vpop.f32.mrb[0].mxu0
      %1411 = vmatprep.mubr.bf16.mxu0 0
      %1412 = vmatmul.mubr.bf16.gmra.mrb[0].mxu0 %v1321
      %v1413 = vpop.f32.mrb[0].mxu0
      %v1414 = vadd.f32 0.0, %v1413
      %v1415 = vpop.f32.mrb[0].mxu0
      %v1416 = vpop.f32.mrb[0].mxu0
      %v1417 = vadd.f32 0.0, %v1416
      %v1418 = vpop.f32.mrb[0].mxu0
      %1419 = vdwg.mxu0
      %v1428 = vunpack.c.l.b16 %v1257
      %v1429 = vunpack.c.l.b16 %v1258
      %v1430 = vunpack.c.l.b16 %v1259
      %v1431 = vunpack.c.l.b16 %v1260
      %v1432 = vunpack.c.l.b16 %v1261
      %v1433 = vunpack.c.l.b16 %v1262
      %v1434 = vunpack.c.l.b16 %v1263
      %v1435 = vunpack.c.l.b16 %v1264
      %v1436 = vpack.c.b16 %v1429, %v1428
      %v1437 = vpack.c.b16 %v1431, %v1430
      %v1438 = vpack.c.b16 %v1433, %v1432
      %v1439 = vpack.c.b16 %v1435, %v1434
      %v1445 = vsel %vm567, %v1249, 0
      %1447 = vmatprep.subr.bf16.mxu0 0
      %1448 = vmatpush1.bf16.msra.mxu0 %v1436
      %1449 = vmatprep.subr.bf16.mxu0 0
      %1450 = vmatpush1.bf16.msra.mxu0 %v1437
      %1451 = vmatprep.subr.bf16.mxu0 0
      %1452 = vmatpush1.bf16.msra.mxu0 %v1438
      %1453 = vmatprep.subr.bf16.mxu0 0
      %1454 = vmatpush1.bf16.msra.mxu0 %v1439
      %1455 = vmatprep.subr.bf16.mxu0 0
      %1456 = vmatpush1.bf16.msra.mxu0 0
      %1457 = vmatprep.subr.bf16.mxu0 0
      %1458 = vmatpush1.bf16.msra.mxu0 0
      %1459 = vmatprep.subr.bf16.mxu0 0
      %1460 = vmatpush1.bf16.msra.mxu0 0
      %1461 = vmatprep.subr.bf16.mxu0 0
      %1462 = vmatpush1.bf16.msra.mxu0 0
      %1463 = vmatprep.subr.bf16.mxu0 0
      %1464 = vmatpush1.bf16.msra.mxu0 0
      %1465 = vmatprep.subr.bf16.mxu0 0
      %1466 = vmatpush1.bf16.msra.mxu0 0
      %1467 = vmatprep.subr.bf16.mxu0 0
      %1468 = vmatpush1.bf16.msra.mxu0 0
      %1469 = vmatprep.subr.bf16.mxu0 0
      %1470 = vmatpush1.bf16.msra.mxu0 0
      %1471 = vmatprep.subr.bf16.mxu0 0
      %1472 = vmatpush1.bf16.msra.mxu0 0
      %1473 = vmatprep.subr.bf16.mxu0 0
      %1474 = vmatpush1.bf16.msra.mxu0 0
      %1475 = vmatprep.subr.bf16.mxu0 0
      %1476 = vmatpush1.bf16.msra.mxu0 0
      %1477 = vmatprep.subr.bf16.mxu0 0
      %1478 = vmatpush1.bf16.msra.mxu0 0
      %1479 = vmatprep.mubr.bf16.mxu0 0
      %1480 = vmatmul.mubr.bf16.gmra.mrb[0].mxu0 %v1445
      %v1481 = vpop.f32.mrb[0].mxu0
      %v1482 = vadd.f32 %v1358, %v1481
      %v1483 = vpop.f32.mrb[0].mxu0
      %v1484 = vpop.f32.mrb[0].mxu0
      %v1485 = vadd.f32 %v1361, %v1484
      %v1486 = vpop.f32.mrb[0].mxu0
      %1487 = vmatprep.mubr.bf16.mxu0 0
      %1488 = vmatmul.mubr.bf16.gmra.mrb[0].mxu0 %v1300
      %v1489 = vpop.f32.mrb[0].mxu0
      %v1490 = vadd.f32 %v1366, %v1489
      %v1491 = vpop.f32.mrb[0].mxu0
      %v1492 = vpop.f32.mrb[0].mxu0
      %v1493 = vadd.f32 %v1369, %v1492
      %v1494 = vpop.f32.mrb[0].mxu0
      %1495 = vmatprep.mubr.bf16.mxu0 0
      %1496 = vmatmul.mubr.bf16.gmra.mrb[0].mxu0 %v1303
      %v1497 = vpop.f32.mrb[0].mxu0
      %v1498 = vadd.f32 %v1374, %v1497
      %v1499 = vpop.f32.mrb[0].mxu0
      %v1500 = vpop.f32.mrb[0].mxu0
      %v1501 = vadd.f32 %v1377, %v1500
      %v1502 = vpop.f32.mrb[0].mxu0
      %1503 = vmatprep.mubr.bf16.mxu0 0
      %1504 = vmatmul.mubr.bf16.gmra.mrb[0].mxu0 %v1306
      %v1505 = vpop.f32.mrb[0].mxu0
      %v1506 = vadd.f32 %v1382, %v1505
      %v1507 = vpop.f32.mrb[0].mxu0
      %v1508 = vpop.f32.mrb[0].mxu0
      %v1509 = vadd.f32 %v1385, %v1508
      %v1510 = vpop.f32.mrb[0].mxu0
      %1511 = vmatprep.mubr.bf16.mxu0 0
      %1512 = vmatmul.mubr.bf16.gmra.mrb[0].mxu0 %v1309
      %v1513 = vpop.f32.mrb[0].mxu0
      %v1514 = vadd.f32 %v1390, %v1513
      %v1515 = vpop.f32.mrb[0].mxu0
      %v1516 = vpop.f32.mrb[0].mxu0
      %v1517 = vadd.f32 %v1393, %v1516
      %v1518 = vpop.f32.mrb[0].mxu0
      %1519 = vmatprep.mubr.bf16.mxu0 0
      %1520 = vmatmul.mubr.bf16.gmra.mrb[0].mxu0 %v1312
      %v1521 = vpop.f32.mrb[0].mxu0
      %v1522 = vadd.f32 %v1398, %v1521
      %v1523 = vpop.f32.mrb[0].mxu0
      %v1524 = vpop.f32.mrb[0].mxu0
      %v1525 = vadd.f32 %v1401, %v1524
      %v1526 = vpop.f32.mrb[0].mxu0
      %1527 = vmatprep.mubr.bf16.mxu0 0
      %1528 = vmatmul.mubr.bf16.gmra.mrb[0].mxu0 %v1315
      %v1529 = vpop.f32.mrb[0].mxu0
      %v1530 = vadd.f32 %v1406, %v1529
      %v1531 = vpop.f32.mrb[0].mxu0
      %v1532 = vpop.f32.mrb[0].mxu0
      %v1533 = vadd.f32 %v1409, %v1532
      %v1534 = vpop.f32.mrb[0].mxu0
      %1535 = vmatprep.mubr.bf16.mxu0 0
      %1536 = vmatmul.mubr.bf16.gmra.mrb[0].mxu0 %v1318
      %v1537 = vpop.f32.mrb[0].mxu0
      %v1538 = vadd.f32 %v1414, %v1537
      %v1539 = vpop.f32.mrb[0].mxu0
      %v1540 = vpop.f32.mrb[0].mxu0
      %v1541 = vadd.f32 %v1417, %v1540
      %v1542 = vpop.f32.mrb[0].mxu0
      %1543 = vdwg.mxu0
      %v1544 = vld [vmem:[#allocation2 + $0x10] sm:$0xff]
      %v1545 = vld [vmem:[#allocation2 + $0x18] sm:$0xff]
      %v1546 = vld [vmem:[#allocation2 + $0x20] sm:$0xff]
      %v1547 = vld [vmem:[#allocation2 + $0x28] sm:$0xff]
      %v1548 = vld [vmem:[#allocation2 + $0x30] sm:$0xff]
      %v1549 = vld [vmem:[#allocation2 + $0x38] sm:$0xff]
      %v1550 = vld [vmem:[#allocation2 + $0x40] sm:$0xff]
      %v1551 = vld [vmem:[#allocation2 + $0x48] sm:$0xff]
      %s1552 = scalar_lea.vmem %s3, 64
      %v1553 = vld [vmem:[%s1552] sm:$0xf]
      %v1554 = vld [vmem:[%s1552 + $0x4] sm:$0xf]
      %v1555 = vld [vmem:[%s1552 + $0x8] sm:$0xf]
      %v1556 = vld [vmem:[%s1552 + $0xc] sm:$0xf]
      %v1557 = vld [vmem:[%s1552 + $0x10] sm:$0xf]
      %v1558 = vld [vmem:[%s1552 + $0x14] sm:$0xf]
      %v1559 = vld [vmem:[%s1552 + $0x18] sm:$0xf]
      %v1560 = vld [vmem:[%s1552 + $0x1c] sm:$0xf]
      %v1569 = vunpack.c.l.b16 %v1553
      %v1570 = vunpack.c.l.b16 %v1554
      %v1571 = vunpack.c.l.b16 %v1555
      %v1572 = vunpack.c.l.b16 %v1556
      %v1573 = vunpack.c.l.b16 %v1557
      %v1574 = vunpack.c.l.b16 %v1558
      %v1575 = vunpack.c.l.b16 %v1559
      %v1576 = vunpack.c.l.b16 %v1560
      %v1577 = vpack.c.b16 %v1570, %v1569
      %v1578 = vpack.c.b16 %v1572, %v1571
      %v1579 = vpack.c.b16 %v1574, %v1573
      %v1580 = vpack.c.b16 %v1576, %v1575
      %v1586 = vsel %vm567, %v1544, 0
      %v1589 = vsel %vm567, %v1545, 0
      %v1592 = vsel %vm567, %v1546, 0
      %v1595 = vsel %vm567, %v1547, 0
      %v1598 = vsel %vm567, %v1548, 0
      %v1601 = vsel %vm567, %v1549, 0
      %v1604 = vsel %vm567, %v1550, 0
      %v1607 = vsel %vm567, %v1551, 0
      %1609 = vmatprep.subr.bf16.mxu0 0
      %1610 = vmatpush1.bf16.msra.mxu0 %v1577
      %1611 = vmatprep.subr.bf16.mxu0 0
      %1612 = vmatpush1.bf16.msra.mxu0 %v1578
      %1613 = vmatprep.subr.bf16.mxu0 0
      %1614 = vmatpush1.bf16.msra.mxu0 %v1579
      %1615 = vmatprep.subr.bf16.mxu0 0
      %1616 = vmatpush1.bf16.msra.mxu0 %v1580
      %1617 = vmatprep.subr.bf16.mxu0 0
      %1618 = vmatpush1.bf16.msra.mxu0 0
      %1619 = vmatprep.subr.bf16.mxu0 0
      %1620 = vmatpush1.bf16.msra.mxu0 0
      %1621 = vmatprep.subr.bf16.mxu0 0
      %1622 = vmatpush1.bf16.msra.mxu0 0
      %1623 = vmatprep.subr.bf16.mxu0 0
      %1624 = vmatpush1.bf16.msra.mxu0 0
      %1625 = vmatprep.subr.bf16.mxu0 0
      %1626 = vmatpush1.bf16.msra.mxu0 0
      %1627 = vmatprep.subr.bf16.mxu0 0
      %1628 = vmatpush1.bf16.msra.mxu0 0
      %1629 = vmatprep.subr.bf16.mxu0 0
      %1630 = vmatpush1.bf16.msra.mxu0 0
      %1631 = vmatprep.subr.bf16.mxu0 0
      %1632 = vmatpush1.bf16.msra.mxu0 0
      %1633 = vmatprep.subr.bf16.mxu0 0
      %1634 = vmatpush1.bf16.msra.mxu0 0
      %1635 = vmatprep.subr.bf16.mxu0 0
      %1636 = vmatpush1.bf16.msra.mxu0 0
      %1637 = vmatprep.subr.bf16.mxu0 0
      %1638 = vmatpush1.bf16.msra.mxu0 0
      %1639 = vmatprep.subr.bf16.mxu0 0
      %1640 = vmatpush1.bf16.msra.mxu0 0
      %1641 = vmatprep.mubr.bf16.mxu0 0
      %1642 = vmatmul.mubr.bf16.gmra.mrb[0].mxu0 %v1586
      %v1643 = vpop.f32.mrb[0].mxu0
      %v1644 = vadd.f32 0.0, %v1643
      %v1645 = vpop.f32.mrb[0].mxu0
      %v1646 = vpop.f32.mrb[0].mxu0
      %v1647 = vadd.f32 0.0, %v1646
      %v1648 = vpop.f32.mrb[0].mxu0
      %1649 = vmatprep.mubr.bf16.mxu0 0
      %1650 = vmatmul.mubr.bf16.gmra.mrb[0].mxu0 %v1589
      %v1651 = vpop.f32.mrb[0].mxu0
      %v1652 = vadd.f32 0.0, %v1651
      %v1653 = vpop.f32.mrb[0].mxu0
      %v1654 = vpop.f32.mrb[0].mxu0
      %v1655 = vadd.f32 0.0, %v1654
      %v1656 = vpop.f32.mrb[0].mxu0
      %1657 = vmatprep.mubr.bf16.mxu0 0
      %1658 = vmatmul.mubr.bf16.gmra.mrb[0].mxu0 %v1592
      %v1659 = vpop.f32.mrb[0].mxu0
      %v1660 = vadd.f32 0.0, %v1659
      %v1661 = vpop.f32.mrb[0].mxu0
      %v1662 = vpop.f32.mrb[0].mxu0
      %v1663 = vadd.f32 0.0, %v1662
      %v1664 = vpop.f32.mrb[0].mxu0
      %1665 = vmatprep.mubr.bf16.mxu0 0
      %1666 = vmatmul.mubr.bf16.gmra.mrb[0].mxu0 %v1595
      %v1667 = vpop.f32.mrb[0].mxu0
      %v1668 = vadd.f32 0.0, %v1667
      %v1669 = vpop.f32.mrb[0].mxu0
      %v1670 = vpop.f32.mrb[0].mxu0
      %v1671 = vadd.f32 0.0, %v1670
      %v1672 = vpop.f32.mrb[0].mxu0
      %1673 = vmatprep.mubr.bf16.mxu0 0
      %1674 = vmatmul.mubr.bf16.gmra.mrb[0].mxu0 %v1598
      %v1675 = vpop.f32.mrb[0].mxu0
      %v1676 = vadd.f32 0.0, %v1675
      %v1677 = vpop.f32.mrb[0].mxu0
      %v1678 = vpop.f32.mrb[0].mxu0
      %v1679 = vadd.f32 0.0, %v1678
      %v1680 = vpop.f32.mrb[0].mxu0
      %1681 = vmatprep.mubr.bf16.mxu0 0
      %1682 = vmatmul.mubr.bf16.gmra.mrb[0].mxu0 %v1601
      %v1683 = vpop.f32.mrb[0].mxu0
      %v1684 = vadd.f32 0.0, %v1683
      %v1685 = vpop.f32.mrb[0].mxu0
      %v1686 = vpop.f32.mrb[0].mxu0
      %v1687 = vadd.f32 0.0, %v1686
      %v1688 = vpop.f32.mrb[0].mxu0
      %1689 = vmatprep.mubr.bf16.mxu0 0
      %1690 = vmatmul.mubr.bf16.gmra.mrb[0].mxu0 %v1604
      %v1691 = vpop.f32.mrb[0].mxu0
      %v1692 = vadd.f32 0.0, %v1691
      %v1693 = vpop.f32.mrb[0].mxu0
      %v1694 = vpop.f32.mrb[0].mxu0
      %v1695 = vadd.f32 0.0, %v1694
      %v1696 = vpop.f32.mrb[0].mxu0
      %1697 = vmatprep.mubr.bf16.mxu0 0
      %1698 = vmatmul.mubr.bf16.gmra.mrb[0].mxu0 %v1607
      %v1699 = vpop.f32.mrb[0].mxu0
      %v1700 = vadd.f32 0.0, %v1699
      %v1701 = vpop.f32.mrb[0].mxu0
      %v1702 = vpop.f32.mrb[0].mxu0
      %v1703 = vadd.f32 0.0, %v1702
      %v1704 = vpop.f32.mrb[0].mxu0
      %1705 = vdwg.mxu0
      %v1706 = vadd.f32 %v1482, %v1644
      %v1707 = vadd.f32 %v1485, %v1647
      %v1708 = vadd.f32 %v1490, %v1652
      %v1709 = vadd.f32 %v1493, %v1655
      %v1710 = vadd.f32 %v1498, %v1660
      %v1711 = vadd.f32 %v1501, %v1663
      %v1712 = vadd.f32 %v1506, %v1668
      %v1713 = vadd.f32 %v1509, %v1671
      %v1714 = vadd.f32 %v1514, %v1676
      %v1715 = vadd.f32 %v1517, %v1679
      %v1716 = vadd.f32 %v1522, %v1684
      %v1717 = vadd.f32 %v1525, %v1687
      %v1718 = vadd.f32 %v1530, %v1692
      %v1719 = vadd.f32 %v1533, %v1695
      %v1720 = vadd.f32 %v1538, %v1700
      %v1721 = vadd.f32 %v1541, %v1703
      %v1722 = vld [vmem:[%s2] sm:$0x1]
      %v1724 = vlaneseq
      %v1725 = vshrl.u32 %v1724, 7
      %v1726 = vsub.s32 0, %v1725
      %v1727 = vrot.slane %v1722, %v1726
      %v1729 = vadd.f32 %v1706, %v1727
      %v1730 = vadd.f32 %v1707, %v1727
      %v1731 = vadd.f32 %v1708, %v1727
      %v1732 = vadd.f32 %v1709, %v1727
      %v1733 = vadd.f32 %v1710, %v1727
      %v1734 = vadd.f32 %v1711, %v1727
      %v1735 = vadd.f32 %v1712, %v1727
      %v1736 = vadd.f32 %v1713, %v1727
      %v1737 = vadd.f32 %v1714, %v1727
      %v1738 = vadd.f32 %v1715, %v1727
      %v1739 = vadd.f32 %v1716, %v1727
      %v1740 = vadd.f32 %v1717, %v1727
      %v1741 = vadd.f32 %v1718, %v1727
      %v1742 = vadd.f32 %v1719, %v1727
      %v1743 = vadd.f32 %v1720, %v1727
      %v1744 = vadd.f32 %v1721, %v1727
      %v1745 = vmax.f32 %v1729, 0.0
      %v1746 = vmax.f32 %v1730, 0.0
      %v1747 = vmax.f32 %v1731, 0.0
      %v1748 = vmax.f32 %v1732, 0.0
      %v1749 = vmax.f32 %v1733, 0.0
      %v1750 = vmax.f32 %v1734, 0.0
      %v1751 = vmax.f32 %v1735, 0.0
      %v1752 = vmax.f32 %v1736, 0.0
      %v1753 = vmax.f32 %v1737, 0.0
      %v1754 = vmax.f32 %v1738, 0.0
      %v1755 = vmax.f32 %v1739, 0.0
      %v1756 = vmax.f32 %v1740, 0.0
      %v1757 = vmax.f32 %v1741, 0.0
      %v1758 = vmax.f32 %v1742, 0.0
      %v1759 = vmax.f32 %v1743, 0.0
      %v1760 = vmax.f32 %v1744, 0.0
      %1761 = vst [vmem:[%s318] sm:$0xff] %v1745
      %1762 = vst [vmem:[%s318 + $0x8] sm:$0xff] %v1746
      %1763 = vst [vmem:[%s318 + $0x10] sm:$0xff] %v1747
      %1764 = vst [vmem:[%s318 + $0x18] sm:$0xff] %v1748
      %1765 = vst [vmem:[%s318 + $0x20] sm:$0xff] %v1749
      %1766 = vst [vmem:[%s318 + $0x28] sm:$0xff] %v1750
      %1767 = vst [vmem:[%s318 + $0x30] sm:$0xff] %v1751
      %1768 = vst [vmem:[%s318 + $0x38] sm:$0xff] %v1752
      %1769 = vst [vmem:[%s318 + $0x40] sm:$0xff] %v1753
      %1770 = vst [vmem:[%s318 + $0x48] sm:$0xff] %v1754
      %1771 = vst [vmem:[%s318 + $0x50] sm:$0xff] %v1755
      %1772 = vst [vmem:[%s318 + $0x58] sm:$0xff] %v1756
      %1773 = vst [vmem:[%s318 + $0x60] sm:$0xff] %v1757
      %1774 = vst [vmem:[%s318 + $0x68] sm:$0xff] %v1758
      %1775 = vst [vmem:[%s318 + $0x70] sm:$0xff] %v1759
      %1776 = vst [vmem:[%s318 + $0x78] sm:$0xff] %v1760
      %p1777 = scmp.lt.s32.totalorder %s18, 1
      %s1778 = scalar_select %p1777, %s18, 1
      %s1779 = smul.addr %s1778, 16
      %s1780 = smul.addr %s1779, 8
      %s1781 = scalar_lea.vmem %s7, %s1780
      // Predicated region
      $region49: #{a_call__.1} parent=47 // pred_check
        %p1782 = pneg %p198
      $region50: #{a_call__.1} parent=47 // pred_check_branch
        %1784 = sbr.rel (%p1782) target = $region52
      $region51: #{a_call__.1} parent=47 // pred_region
        _
      $region52: #{a_call__.1} parent=47 // pred_fallthru
        _
    $region48: #{a_call__.1} parent=5 // pred_fallthru
      _
    %p1785 = scmp.le.s32.totalorder 2, %s13
    // Predicated region
    $region53: #{a_call__.1} parent=5 // pred_check
      %p1786 = pneg %p1785
    $region54: #{a_call__.1} parent=5 // pred_check_branch
      %1788 = sbr.rel (%p1786) target = $region56
    $region55: #{a_call__.1} parent=5 // pred_region
      %s1789 = ssub.s32 %s13, 2
      // Predicated region
      $region57: #{a_call__.1} parent=55 // pred_check
        %p1790 = pneg %p204
      $region58: #{a_call__.1} parent=55 // pred_check_branch
        %1792 = sbr.rel (%p1790) target = $region60
      $region59: #{a_call__.1} parent=55 // pred_region
        %p1793 = scmp.lt.s32.totalorder %s19, 1
        %s1794 = scalar_select %p1793, %s19, 1
        %s1795 = smul.addr %s1794, 16
        %s1796 = smul.addr %s1795, 8
        %s1797 = scalar_lea.vmem %s7, %s1796
      $region60: #{a_call__.1} parent=55 // pred_fallthru
        _
    $region56: #{a_call__.1} parent=5 // pred_fallthru
      _
  $region6: #{a_call__.1} parent=0 // loop_footer
    %s17 = sadd.s32 1, %s13
  $region7: #{a_call__.1} parent=0 // loop_footer_branch
    %12 = sbr.rel target = $region3
  $region8: #{a_call__.1} parent=0 // loop_exit
    _

</llo_original>
